<compile_context>
chip_gen: v7x
topology: tpu7x:2x2x1
jax: 0.10.0
libtpu: 0.0.40
codegen_flags: <defaults>
</compile_context>

<pallas_src>
import math
from functools import partial

import numpy as np
import jax
import jax.numpy as jnp
from jax import lax
from jax.experimental import pallas as pl
from jax.experimental.pallas import tpu as pltpu

NEG_SLOPE = 0.01  # nn.LeakyReLU default negative_slope


def _lrelu(x):
    return jnp.where(x >= 0, x, NEG_SLOPE * x)


# --------------------------------------------------------------------------
# Fused whole-network kernel (row layout: activations are (B*L, C) slabs)
# --------------------------------------------------------------------------
def _batch_id(BL, L, dim):
    """In-kernel batch-id plane for the block-diagonal attention mask."""
    idx = lax.broadcasted_iota(jnp.int32, (BL, BL), dim)
    if L & (L - 1) == 0:                      # power of two -> cheap shift
        return idx >> (L.bit_length() - 1)
    return idx // L


def _build_kernel(n_blocks, kf, vf, C, B, L0):
    """n_blocks = (#intermediate MainBlocks) + 1 (the last MainBlock)."""
    Ls = [L0 >> i for i in range(n_blocks)]   # length seen by each block

    def kernel(x_ref, wft_ref, bf_ref, w1t_ref, b1_ref, wqkvt_ref, bqkv_ref,
               *rest):
        pool_refs = rest[:n_blocks - 1]       # avg-pool matmuls (left-mult)
        wlt_ref, bl_ref, fcfold_ref, bfc_ref, gam_ref, o_ref = \
            rest[n_blocks - 1:]

        # first_module: SN 1x1 conv + LeakyReLU  ((B*L, C0) @ (C0, 32))
        act = _lrelu(jnp.dot(x_ref[...], wft_ref[...],
                             preferred_element_type=jnp.float32) + bf_ref[...])

        # MainBlocks (statically unrolled; shapes shrink at each pooled level)
        for blk in range(n_blocks):
            L = Ls[blk]
            BL = B * L

            # SN conv 32->32 + LeakyReLU
            act1 = _lrelu(jnp.dot(act, w1t_ref[blk],
                                  preferred_element_type=jnp.float32)
                          + b1_ref[blk])

            # fused q/k/v projection: ONE matmul against [Wq^T|Wk^T|Wv^T]
            qkv = (jnp.dot(act1, wqkvt_ref[blk],
                           preferred_element_type=jnp.float32)
                   + bqkv_ref[blk])
            q = qkv[:, :kf]                   # (BL, kf)
            k = qkv[:, kf:2 * kf]             # (BL, kf)
            v = qkv[:, 2 * kf:]               # (BL, vf)

            # energy[l, m] = sum_f q[l, f] * k[m, f]   (contract-last-dims)
            energy = lax.dot_general(q, k, (((1,), (1,)), ((), ())),
                                     preferred_element_type=jnp.float32)

            # block-diagonal mask generated in-kernel: attention stays within
            # each batch element even though B is folded into the token axis.
            same = _batch_id(BL, L, 0) == _batch_id(BL, L, 1)
            energy = jnp.where(same, energy, -1e30)
            energy = energy - jnp.max(energy, axis=-1, keepdims=True)
            p = jnp.exp(energy)
            attn = p * pl.reciprocal(jnp.sum(p, axis=-1, keepdims=True),
                                     approx=True)

            # out[l, c] = sum_m attn[l, m] * v[m, c]
            out = jnp.dot(attn, v, preferred_element_type=jnp.float32)
            act = gam_ref[blk] * out + act1   # Self_Attn residual (gamma: SMEM)

            # F.avg_pool1d(2) after every intermediate block (pairs of rows
            # never straddle batch segments because L is even).
            if blk < n_blocks - 1:
                act = jnp.dot(pool_refs[blk][...], act,
                              preferred_element_type=jnp.float32)

        # head: SN conv 32->1 + LeakyReLU, then batch-folded SN Linear(8, 1)
        y = _lrelu(jnp.dot(act, wlt_ref[...],
                           preferred_element_type=jnp.float32) + bl_ref[...])
        o_ref[...] = (jnp.dot(fcfold_ref[...], y,
                              preferred_element_type=jnp.float32)
                      + bfc_ref[...])                               # (B, 1)

    return kernel


# --------------------------------------------------------------------------
# Constant-operand / weight-packing builders (trace-time under jit)
# --------------------------------------------------------------------------
def _pool_matrix_T(BL):
    """avg_pool1d(2) over the token axis as a (BL/2, BL) left-multiply."""
    m = np.zeros((BL // 2, BL), np.float32)
    m[np.arange(BL) // 2, np.arange(BL)] = 0.5
    return jnp.asarray(m)


def _pack_blocks_row(blocks):
    w1t, b1r, wqkvt, bqkvr, gam = [], [], [], [], []
    for (w1, b1, wq, bq, wk, bk, wv, bv, gamma) in blocks:
        w1t.append(w1.T)                                            # (C, C)
        b1r.append(b1.T)                                            # (1, C)
        wqkvt.append(jnp.concatenate([wq.T, wk.T, wv.T], axis=1))   # (C, 2kf+vf)
        bqkvr.append(jnp.concatenate([bq.T, bk.T, bv.T], axis=1))   # (1, 2kf+vf)
        gam.append(gamma.reshape(()))
    return (jnp.stack(w1t), jnp.stack(b1r), jnp.stack(wqkvt),
            jnp.stack(bqkvr), jnp.stack(gam))


# --------------------------------------------------------------------------
# Plain-JAX glue: embedding broadcast / concat / initial avg_pool1d
# --------------------------------------------------------------------------
def _avg_pool1d(x, k):
    B, C, L = x.shape
    return x.reshape(B, C, L // k, k).mean(axis=-1)


def preprocess(Z, X, params, fake_len):
    # X: (B, T, C_x) as passed to the PyTorch forward; Z: (B, C_z, L_z)
    B, T, _ = X.shape
    E = params["embedding"].shape[1]
    reduce_factor = int(math.log2(fake_len)) - int(math.log2(Z.shape[2]))
    Xp = jnp.transpose(X, (0, 2, 1))                               # (B, C_x, T)
    phi = jnp.broadcast_to(params["embedding"][:, :, None], (B, E, T))
    Xc = jnp.concatenate([phi, Xp], axis=1)                        # (B, E+C_x, T)
    red = _avg_pool1d(Xc, 2 ** reduce_factor)
    return jnp.concatenate([red, Z], axis=1)                       # (B, NF+1, L_z)


def _fused_forward(Z, X, params, fake_len):
    x = preprocess(Z, X, params, fake_len)                         # (B, C0, L0)
    B, C0, L0 = x.shape
    # row-major token layout: (B*L0, C0)
    x_row = jnp.transpose(x, (0, 2, 1)).reshape(B * L0, C0)

    blocks = list(params["blocks"]) + [params["last_block"]]
    n_blocks = len(blocks)
    kf = blocks[0][2].shape[0]   # key_features
    vf = blocks[0][6].shape[0]   # value_features
    C = blocks[0][0].shape[0]    # channels (32)
    w1t, b1r, wqkvt, bqkvr, gam = _pack_blocks_row(blocks)

    pools = []
    L = L0
    for _ in range(n_blocks - 1):
        pools.append(_pool_matrix_T(B * L))
        L //= 2
    Lf = L                                                         # final length
    assert Lf == params["w_fc"].shape[1], "fc expects final length == 8"

    # fc(Lf, 1) applied per batch element in the folded layout:
    #   fcfold[b, b*Lf + l] = w_fc[0, l]
    fcfold = (jnp.eye(B, dtype=jnp.float32)[:, :, None]
              * params["w_fc"][0][None, None, :]).reshape(B, B * Lf)

    kernel = _build_kernel(n_blocks, kf, vf, C, B, L0)
    vmem = pl.BlockSpec(memory_space=pltpu.MemorySpace.VMEM)
    smem = pl.BlockSpec(memory_space=pltpu.MemorySpace.SMEM)

    args = (x_row, params["w_first"].T, params["b_first"].T,
            w1t, b1r, wqkvt, bqkvr,
            *pools,
            params["w_last"].T, params["b_last"].T, fcfold, params["b_fc"],
            gam)
    in_specs = [vmem] * (len(args) - 1) + [smem]   # gamma vector lives in SMEM

    out = pl.pallas_call(
        kernel,
        out_shape=jax.ShapeDtypeStruct((B, 1), jnp.float32),
        in_specs=in_specs,
        out_specs=vmem,
        compiler_params=pltpu.CompilerParams(vmem_limit_bytes=32 * 1024 * 1024),
    )(*args)
    return out                                                      # (B, 1)


# jit: constant construction (pool matrices, fc-fold, weight packing) is done
# once at trace time; nothing is rebuilt on the host per call.
discriminator_forward = jax.jit(_fused_forward, static_argnums=(3,))


# --------------------------------------------------------------------------
# Pure-JAX reference (mirrors the PyTorch forward) for correctness check
# --------------------------------------------------------------------------
def _ref_conv(x, w, b):
    return jnp.einsum("oc,bcl->bol", w, x) + b[None, :, :]


def _ref_main_block(x, bp):
    w1, b1, wq, bq, wk, bk, wv, bv, gamma = bp
    h = _lrelu(_ref_conv(x, w1, b1))
    q, k, v = _ref_conv(h, wq, bq), _ref_conv(h, wk, bk), _ref_conv(h, wv, bv)
    energy = jnp.einsum("bcl,bcm->blm", q, k)
    attn = jax.nn.softmax(energy, axis=-1)
    out = jnp.einsum("blm,bcm->bcl", attn, v)
    return gamma[0, 0] * out + h


def ref_forward(Z, X, params, fake_len):
    x = preprocess(Z, X, params, fake_len)
    x = _lrelu(_ref_conv(x, params["w_first"], params["b_first"]))
    for bp in params["blocks"]:
        x = _avg_pool1d(_ref_main_block(x, bp), 2)
    x = _ref_main_block(x, params["last_block"])
    x = _lrelu(_ref_conv(x, params["w_last"], params["b_last"]))   # (B, 1, 8)
    y = x[:, 0, :]                                                 # (B, 8)
    return y @ params["w_fc"].T + params["b_fc"][:, 0]             # (B, 1)


# --------------------------------------------------------------------------
# Deterministic parameter initialization (shapes from the module __init__)
# --------------------------------------------------------------------------
def _spectral_normalize(w):
    # nn.utils.spectral_norm: W / sigma(W); exact largest singular value here.
    # TODO(synk): torch uses a power-iteration estimate of sigma; this is an
    # init-time weight-prep detail, not part of the fused forward kernel.
    return w / jnp.linalg.norm(w, ord=2)


def _init_conv(key, out_c, in_c, sn=False):
    kw, kb = jax.random.split(key)
    bound = 1.0 / math.sqrt(in_c)
    w = jax.random.uniform(kw, (out_c, in_c), jnp.float32, -bound, bound)
    b = jax.random.uniform(kb, (out_c, 1), jnp.float32, -bound, bound)
    if sn:
        w = _spectral_normalize(w)
    return w, b


def _init_main_block(key, value_features, key_features):
    k = jax.random.split(key, 4)
    w1, b1 = _init_conv(k[0], 32, 32, sn=True)
    wq, bq = _init_conv(k[1], key_features, 32)
    wk, bk = _init_conv(k[2], key_features, 32)
    wv, bv = _init_conv(k[3], value_features, 32)
    # PyTorch inits gamma = 0 (attention branch is a no-op at init); we use a
    # small nonzero value so the attention path is actually exercised/tested.
    gamma = jnp.full((1, 1), 0.1, jnp.float32)
    return (w1, b1, wq, bq, wk, bk, wv, bv, gamma)


def make_params(key, *, embedding_dim, fake_len, num_features, batch_size,
                value_features, key_features):
    assert value_features == 32, \
        "Self_Attn residual add requires value_features == channels (32)"
    keys = jax.random.split(key, 16)
    it = iter(keys)
    params = {}
    params["embedding"] = jax.random.normal(
        next(it), (batch_size, embedding_dim), jnp.float32)
    params["w_first"], params["b_first"] = _init_conv(
        next(it), 32, num_features + 1, sn=True)
    step = int(math.log2(fake_len)) - 2
    params["blocks"] = [_init_main_block(next(it), value_features, key_features)
                        for _ in range(step - 1)]
    params["last_block"] = _init_main_block(next(it), value_features, key_features)
    params["w_last"], params["b_last"] = _init_conv(next(it), 1, 32, sn=True)
    kw, kb = jax.random.split(next(it))
    bound = 1.0 / math.sqrt(8)
    params["w_fc"] = _spectral_normalize(
        jax.random.uniform(kw, (1, 8), jnp.float32, -bound, bound))
    params["b_fc"] = jax.random.uniform(kb, (1, 1), jnp.float32, -bound, bound)
    return params


# --------------------------------------------------------------------------
if __name__ == "__main__":
    # Config (small, consistent with the module):
    #   fake_len=16 -> step=2 -> 1 intermediate MainBlock; fc(8,1) requires the
    #   final length to be 8, hence Z length == fake_len (reduce_factor = 0).
    #   channel budget: embedding_dim + C_x + C_z == num_features + 1
    embedding_dim, fake_len, num_features = 4, 16, 8
    batch_size, value_features, key_features = 2, 32, 8
    c_x = num_features - embedding_dim   # raw feature channels of X
    c_z = 1                              # channels of Z

    key = jax.random.PRNGKey(0)
    kp, kx, kz = jax.random.split(key, 3)
    params = make_params(kp, embedding_dim=embedding_dim, fake_len=fake_len,
                         num_features=num_features, batch_size=batch_size,
                         value_features=value_features,
                         key_features=key_features)

    X = jax.random.normal(kx, (batch_size, fake_len, c_x), jnp.float32)  # (B, T, C_x)
    Z = jax.random.normal(kz, (batch_size, c_z, fake_len), jnp.float32)  # (B, C_z, L)

    out = discriminator_forward(Z, X, params, fake_len)
    out = jax.block_until_ready(out)
    assert out.shape == (batch_size, 1)

    ref = jax.block_until_ready(ref_forward(Z, X, params, fake_len))
    np.testing.assert_allclose(np.asarray(out), np.asarray(ref),
                               rtol=1e-2, atol=1e-2)

    print("KERNEL_OK")
</pallas_src>

<mosaic_0001>
module attributes {stable_mosaic.version = 11 : i64} {
  func.func @kernel(%arg0: memref<32x9xf32, #tpu.memory_space<vmem>>, %arg1: memref<9x32xf32, #tpu.memory_space<vmem>>, %arg2: memref<1x32xf32, #tpu.memory_space<vmem>>, %arg3: memref<2x32x32xf32, #tpu.memory_space<vmem>>, %arg4: memref<2x1x32xf32, #tpu.memory_space<vmem>>, %arg5: memref<2x32x48xf32, #tpu.memory_space<vmem>>, %arg6: memref<2x1x48xf32, #tpu.memory_space<vmem>>, %arg7: memref<16x32xf32, #tpu.memory_space<vmem>>, %arg8: memref<32x1xf32, #tpu.memory_space<vmem>>, %arg9: memref<1x1xf32, #tpu.memory_space<vmem>>, %arg10: memref<2x16xf32, #tpu.memory_space<vmem>>, %arg11: memref<1x1xf32, #tpu.memory_space<vmem>>, %arg12: memref<2xf32, #tpu.memory_space<smem>>, %arg13: memref<2x1xf32, #tpu.memory_space<vmem>>) attributes {dimension_semantics = [], scalar_prefetch = 0 : i64, scratch_operands = 0 : i64, tpu.core_type = #tpu.core_type<tc>} {
    %c0 = arith.constant 0 : index
    %c0_0 = arith.constant 0 : index
    %0 = vector.load %arg0[%c0, %c0_0] : memref<32x9xf32, #tpu.memory_space<vmem>>, vector<32x9xf32>
    %c0_1 = arith.constant 0 : index
    %c0_2 = arith.constant 0 : index
    %1 = vector.load %arg1[%c0_1, %c0_2] : memref<9x32xf32, #tpu.memory_space<vmem>>, vector<9x32xf32>
    %cst = arith.constant dense<0.000000e+00> : vector<32x32xf32>
    %2 = tpu.matmul %0, %1, %cst {dimension_numbers = #tpu.dot_dimension_numbers<[1], [0], [0], [1], [0, 0, 1, 1], [], []>} : vector<32x9xf32>, vector<9x32xf32>, vector<32x32xf32> -> vector<32x32xf32>
    %c0_3 = arith.constant 0 : index
    %c0_4 = arith.constant 0 : index
    %3 = vector.load %arg2[%c0_3, %c0_4] : memref<1x32xf32, #tpu.memory_space<vmem>>, vector<1x32xf32>
    %4 = vector.broadcast %3 : vector<1x32xf32> to vector<32x32xf32>
    %5 = arith.addf %2, %4 : vector<32x32xf32>
    %cst_5 = arith.constant 0.000000e+00 : f32
    %6 = vector.broadcast %cst_5 : f32 to vector<32x32xf32>
    %7 = arith.cmpf oge, %5, %6 : vector<32x32xf32>
    %cst_6 = arith.constant 0.00999999977 : f32
    %8 = vector.broadcast %cst_6 : f32 to vector<32x32xf32>
    %9 = arith.mulf %8, %5 : vector<32x32xf32>
    %10 = arith.select %7, %5, %9 : vector<32x32xi1>, vector<32x32xf32>
    %c0_7 = arith.constant 0 : index
    %c0_8 = arith.constant 0 : index
    %c0_9 = arith.constant 0 : index
    %11 = vector.load %arg3[%c0_7, %c0_8, %c0_9] : memref<2x32x32xf32, #tpu.memory_space<vmem>>, vector<1x32x32xf32>
    %12 = vector.shape_cast %11 : vector<1x32x32xf32> to vector<32x32xf32>
    %cst_10 = arith.constant dense<0.000000e+00> : vector<32x32xf32>
    %13 = tpu.matmul %10, %12, %cst_10 {dimension_numbers = #tpu.dot_dimension_numbers<[1], [0], [0], [1], [0, 0, 1, 1], [], []>} : vector<32x32xf32>, vector<32x32xf32>, vector<32x32xf32> -> vector<32x32xf32>
    %c0_11 = arith.constant 0 : index
    %c0_12 = arith.constant 0 : index
    %c0_13 = arith.constant 0 : index
    %14 = vector.load %arg4[%c0_11, %c0_12, %c0_13] : memref<2x1x32xf32, #tpu.memory_space<vmem>>, vector<1x1x32xf32>
    %15 = vector.shape_cast %14 : vector<1x1x32xf32> to vector<1x32xf32>
    %16 = vector.broadcast %15 : vector<1x32xf32> to vector<32x32xf32>
    %17 = arith.addf %13, %16 : vector<32x32xf32>
    %cst_14 = arith.constant 0.000000e+00 : f32
    %18 = vector.broadcast %cst_14 : f32 to vector<32x32xf32>
    %19 = arith.cmpf oge, %17, %18 : vector<32x32xf32>
    %cst_15 = arith.constant 0.00999999977 : f32
    %20 = vector.broadcast %cst_15 : f32 to vector<32x32xf32>
    %21 = arith.mulf %20, %17 : vector<32x32xf32>
    %22 = arith.select %19, %17, %21 : vector<32x32xi1>, vector<32x32xf32>
    %c0_16 = arith.constant 0 : index
    %c0_17 = arith.constant 0 : index
    %c0_18 = arith.constant 0 : index
    %23 = vector.load %arg5[%c0_16, %c0_17, %c0_18] : memref<2x32x48xf32, #tpu.memory_space<vmem>>, vector<1x32x48xf32>
    %24 = vector.shape_cast %23 : vector<1x32x48xf32> to vector<32x48xf32>
    %cst_19 = arith.constant dense<0.000000e+00> : vector<32x48xf32>
    %25 = tpu.matmul %22, %24, %cst_19 {dimension_numbers = #tpu.dot_dimension_numbers<[1], [0], [0], [1], [0, 0, 1, 1], [], []>} : vector<32x32xf32>, vector<32x48xf32>, vector<32x48xf32> -> vector<32x48xf32>
    %c0_20 = arith.constant 0 : index
    %c0_21 = arith.constant 0 : index
    %c0_22 = arith.constant 0 : index
    %26 = vector.load %arg6[%c0_20, %c0_21, %c0_22] : memref<2x1x48xf32, #tpu.memory_space<vmem>>, vector<1x1x48xf32>
    %27 = vector.shape_cast %26 : vector<1x1x48xf32> to vector<1x48xf32>
    %28 = vector.broadcast %27 : vector<1x48xf32> to vector<32x48xf32>
    %29 = arith.addf %25, %28 : vector<32x48xf32>
    %30 = vector.extract_strided_slice %29 {offsets = [0, 0], sizes = [32, 8], strides = [1, 1]} : vector<32x48xf32> to vector<32x8xf32>
    %31 = vector.extract_strided_slice %29 {offsets = [0, 8], sizes = [32, 8], strides = [1, 1]} : vector<32x48xf32> to vector<32x8xf32>
    %32 = vector.extract_strided_slice %29 {offsets = [0, 16], sizes = [32, 32], strides = [1, 1]} : vector<32x48xf32> to vector<32x32xf32>
    %cst_23 = arith.constant dense<0.000000e+00> : vector<32x32xf32>
    %33 = tpu.matmul %30, %31, %cst_23 {dimension_numbers = #tpu.dot_dimension_numbers<[1], [1], [0], [0], [0, 0, 1, 0], [], []>} : vector<32x8xf32>, vector<32x8xf32>, vector<32x32xf32> -> vector<32x32xf32>
    %34 = tpu.iota {dimensions = array<i32: 0>} : vector<32x32xi32>
    %c4_i32 = arith.constant 4 : i32
    %35 = vector.broadcast %c4_i32 : i32 to vector<32x32xi32>
    %36 = arith.shrsi %34, %35 : vector<32x32xi32>
    %37 = tpu.iota {dimensions = array<i32: 1>} : vector<32x32xi32>
    %c4_i32_24 = arith.constant 4 : i32
    %38 = vector.broadcast %c4_i32_24 : i32 to vector<32x32xi32>
    %39 = arith.shrsi %37, %38 : vector<32x32xi32>
    %40 = arith.cmpi eq, %36, %39 : vector<32x32xi32>
    %cst_25 = arith.constant -1.000000e+30 : f32
    %41 = vector.broadcast %cst_25 : f32 to vector<32x32xf32>
    %42 = arith.select %40, %33, %41 : vector<32x32xi1>, vector<32x32xf32>
    %cst_26 = arith.constant dense<0xFF800000> : vector<32xf32>
    %43 = vector.multi_reduction <maximumf>, %42, %cst_26 [1] : vector<32x32xf32> to vector<32xf32>
    %44 = vector.shape_cast %43 : vector<32xf32> to vector<32x1xf32>
    %45 = vector.broadcast %44 : vector<32x1xf32> to vector<32x32xf32>
    %46 = arith.subf %42, %45 : vector<32x32xf32>
    %47 = math.exp %46 : vector<32x32xf32>
    %cst_27 = arith.constant dense<0.000000e+00> : vector<32xf32>
    %48 = vector.multi_reduction <add>, %47, %cst_27 [1] : vector<32x32xf32> to vector<32xf32>
    %49 = vector.shape_cast %48 : vector<32xf32> to vector<32x1xf32>
    %50 = tpu.reciprocal %49 {approx = true} : vector<32x1xf32> -> vector<32x1xf32>
    %51 = vector.broadcast %50 : vector<32x1xf32> to vector<32x32xf32>
    %52 = arith.mulf %47, %51 : vector<32x32xf32>
    %cst_28 = arith.constant dense<0.000000e+00> : vector<32x32xf32>
    %53 = tpu.matmul %52, %32, %cst_28 {dimension_numbers = #tpu.dot_dimension_numbers<[1], [0], [0], [1], [0, 0, 1, 1], [], []>} : vector<32x32xf32>, vector<32x32xf32>, vector<32x32xf32> -> vector<32x32xf32>
    %c0_29 = arith.constant 0 : index
    %54 = memref.load %arg12[%c0_29] : memref<2xf32, #tpu.memory_space<smem>>
    %55 = vector.broadcast %54 : f32 to vector<32x32xf32>
    %56 = arith.mulf %55, %53 : vector<32x32xf32>
    %57 = arith.addf %56, %22 : vector<32x32xf32>
    %c0_30 = arith.constant 0 : index
    %c0_31 = arith.constant 0 : index
    %58 = vector.load %arg7[%c0_30, %c0_31] : memref<16x32xf32, #tpu.memory_space<vmem>>, vector<16x32xf32>
    %cst_32 = arith.constant dense<0.000000e+00> : vector<16x32xf32>
    %59 = tpu.matmul %58, %57, %cst_32 {dimension_numbers = #tpu.dot_dimension_numbers<[1], [0], [0], [1], [0, 0, 1, 1], [], []>} : vector<16x32xf32>, vector<32x32xf32>, vector<16x32xf32> -> vector<16x32xf32>
    %c1 = arith.constant 1 : index
    %c0_33 = arith.constant 0 : index
    %c0_34 = arith.constant 0 : index
    %60 = vector.load %arg3[%c1, %c0_33, %c0_34] : memref<2x32x32xf32, #tpu.memory_space<vmem>>, vector<1x32x32xf32>
    %61 = vector.shape_cast %60 : vector<1x32x32xf32> to vector<32x32xf32>
    %cst_35 = arith.constant dense<0.000000e+00> : vector<16x32xf32>
    %62 = tpu.matmul %59, %61, %cst_35 {dimension_numbers = #tpu.dot_dimension_numbers<[1], [0], [0], [1], [0, 0, 1, 1], [], []>} : vector<16x32xf32>, vector<32x32xf32>, vector<16x32xf32> -> vector<16x32xf32>
    %c1_36 = arith.constant 1 : index
    %c0_37 = arith.constant 0 : index
    %c0_38 = arith.constant 0 : index
    %63 = vector.load %arg4[%c1_36, %c0_37, %c0_38] : memref<2x1x32xf32, #tpu.memory_space<vmem>>, vector<1x1x32xf32>
    %64 = vector.shape_cast %63 : vector<1x1x32xf32> to vector<1x32xf32>
    %65 = vector.broadcast %64 : vector<1x32xf32> to vector<16x32xf32>
    %66 = arith.addf %62, %65 : vector<16x32xf32>
    %cst_39 = arith.constant 0.000000e+00 : f32
    %67 = vector.broadcast %cst_39 : f32 to vector<16x32xf32>
    %68 = arith.cmpf oge, %66, %67 : vector<16x32xf32>
    %cst_40 = arith.constant 0.00999999977 : f32
    %69 = vector.broadcast %cst_40 : f32 to vector<16x32xf32>
    %70 = arith.mulf %69, %66 : vector<16x32xf32>
    %71 = arith.select %68, %66, %70 : vector<16x32xi1>, vector<16x32xf32>
    %c1_41 = arith.constant 1 : index
    %c0_42 = arith.constant 0 : index
    %c0_43 = arith.constant 0 : index
    %72 = vector.load %arg5[%c1_41, %c0_42, %c0_43] : memref<2x32x48xf32, #tpu.memory_space<vmem>>, vector<1x32x48xf32>
    %73 = vector.shape_cast %72 : vector<1x32x48xf32> to vector<32x48xf32>
    %cst_44 = arith.constant dense<0.000000e+00> : vector<16x48xf32>
    %74 = tpu.matmul %71, %73, %cst_44 {dimension_numbers = #tpu.dot_dimension_numbers<[1], [0], [0], [1], [0, 0, 1, 1], [], []>} : vector<16x32xf32>, vector<32x48xf32>, vector<16x48xf32> -> vector<16x48xf32>
    %c1_45 = arith.constant 1 : index
    %c0_46 = arith.constant 0 : index
    %c0_47 = arith.constant 0 : index
    %75 = vector.load %arg6[%c1_45, %c0_46, %c0_47] : memref<2x1x48xf32, #tpu.memory_space<vmem>>, vector<1x1x48xf32>
    %76 = vector.shape_cast %75 : vector<1x1x48xf32> to vector<1x48xf32>
    %77 = vector.broadcast %76 : vector<1x48xf32> to vector<16x48xf32>
    %78 = arith.addf %74, %77 : vector<16x48xf32>
    %79 = vector.extract_strided_slice %78 {offsets = [0, 0], sizes = [16, 8], strides = [1, 1]} : vector<16x48xf32> to vector<16x8xf32>
    %80 = vector.extract_strided_slice %78 {offsets = [0, 8], sizes = [16, 8], strides = [1, 1]} : vector<16x48xf32> to vector<16x8xf32>
    %81 = vector.extract_strided_slice %78 {offsets = [0, 16], sizes = [16, 32], strides = [1, 1]} : vector<16x48xf32> to vector<16x32xf32>
    %cst_48 = arith.constant dense<0.000000e+00> : vector<16x16xf32>
    %82 = tpu.matmul %79, %80, %cst_48 {dimension_numbers = #tpu.dot_dimension_numbers<[1], [1], [0], [0], [0, 0, 1, 0], [], []>} : vector<16x8xf32>, vector<16x8xf32>, vector<16x16xf32> -> vector<16x16xf32>
    %83 = tpu.iota {dimensions = array<i32: 0>} : vector<16x16xi32>
    %c3_i32 = arith.constant 3 : i32
    %84 = vector.broadcast %c3_i32 : i32 to vector<16x16xi32>
    %85 = arith.shrsi %83, %84 : vector<16x16xi32>
    %86 = tpu.iota {dimensions = array<i32: 1>} : vector<16x16xi32>
    %c3_i32_49 = arith.constant 3 : i32
    %87 = vector.broadcast %c3_i32_49 : i32 to vector<16x16xi32>
    %88 = arith.shrsi %86, %87 : vector<16x16xi32>
    %89 = arith.cmpi eq, %85, %88 : vector<16x16xi32>
    %cst_50 = arith.constant -1.000000e+30 : f32
    %90 = vector.broadcast %cst_50 : f32 to vector<16x16xf32>
    %91 = arith.select %89, %82, %90 : vector<16x16xi1>, vector<16x16xf32>
    %cst_51 = arith.constant dense<0xFF800000> : vector<16xf32>
    %92 = vector.multi_reduction <maximumf>, %91, %cst_51 [1] : vector<16x16xf32> to vector<16xf32>
    %93 = vector.shape_cast %92 : vector<16xf32> to vector<16x1xf32>
    %94 = vector.broadcast %93 : vector<16x1xf32> to vector<16x16xf32>
    %95 = arith.subf %91, %94 : vector<16x16xf32>
    %96 = math.exp %95 : vector<16x16xf32>
    %cst_52 = arith.constant dense<0.000000e+00> : vector<16xf32>
    %97 = vector.multi_reduction <add>, %96, %cst_52 [1] : vector<16x16xf32> to vector<16xf32>
    %98 = vector.shape_cast %97 : vector<16xf32> to vector<16x1xf32>
    %99 = tpu.reciprocal %98 {approx = true} : vector<16x1xf32> -> vector<16x1xf32>
    %100 = vector.broadcast %99 : vector<16x1xf32> to vector<16x16xf32>
    %101 = arith.mulf %96, %100 : vector<16x16xf32>
    %cst_53 = arith.constant dense<0.000000e+00> : vector<16x32xf32>
    %102 = tpu.matmul %101, %81, %cst_53 {dimension_numbers = #tpu.dot_dimension_numbers<[1], [0], [0], [1], [0, 0, 1, 1], [], []>} : vector<16x16xf32>, vector<16x32xf32>, vector<16x32xf32> -> vector<16x32xf32>
    %c1_54 = arith.constant 1 : index
    %103 = memref.load %arg12[%c1_54] : memref<2xf32, #tpu.memory_space<smem>>
    %104 = vector.broadcast %103 : f32 to vector<16x32xf32>
    %105 = arith.mulf %104, %102 : vector<16x32xf32>
    %106 = arith.addf %105, %71 : vector<16x32xf32>
    %c0_55 = arith.constant 0 : index
    %c0_56 = arith.constant 0 : index
    %107 = vector.load %arg8[%c0_55, %c0_56] : memref<32x1xf32, #tpu.memory_space<vmem>>, vector<32x1xf32>
    %cst_57 = arith.constant dense<0.000000e+00> : vector<16x1xf32>
    %108 = tpu.matmul %106, %107, %cst_57 {dimension_numbers = #tpu.dot_dimension_numbers<[1], [0], [0], [1], [0, 0, 1, 1], [], []>} : vector<16x32xf32>, vector<32x1xf32>, vector<16x1xf32> -> vector<16x1xf32>
    %c0_58 = arith.constant 0 : index
    %c0_59 = arith.constant 0 : index
    %109 = vector.load %arg9[%c0_58, %c0_59] : memref<1x1xf32, #tpu.memory_space<vmem>>, vector<1x1xf32>
    %110 = vector.broadcast %109 : vector<1x1xf32> to vector<16x1xf32>
    %111 = arith.addf %108, %110 : vector<16x1xf32>
    %cst_60 = arith.constant 0.000000e+00 : f32
    %112 = vector.broadcast %cst_60 : f32 to vector<16x1xf32>
    %113 = arith.cmpf oge, %111, %112 : vector<16x1xf32>
    %cst_61 = arith.constant 0.00999999977 : f32
    %114 = vector.broadcast %cst_61 : f32 to vector<16x1xf32>
    %115 = arith.mulf %114, %111 : vector<16x1xf32>
    %116 = arith.select %113, %111, %115 : vector<16x1xi1>, vector<16x1xf32>
    %c0_62 = arith.constant 0 : index
    %c0_63 = arith.constant 0 : index
    %117 = vector.load %arg10[%c0_62, %c0_63] : memref<2x16xf32, #tpu.memory_space<vmem>>, vector<2x16xf32>
    %cst_64 = arith.constant dense<0.000000e+00> : vector<2x1xf32>
    %118 = tpu.matmul %117, %116, %cst_64 {dimension_numbers = #tpu.dot_dimension_numbers<[1], [0], [0], [1], [0, 0, 1, 1], [], []>} : vector<2x16xf32>, vector<16x1xf32>, vector<2x1xf32> -> vector<2x1xf32>
    %c0_65 = arith.constant 0 : index
    %c0_66 = arith.constant 0 : index
    %119 = vector.load %arg11[%c0_65, %c0_66] : memref<1x1xf32, #tpu.memory_space<vmem>>, vector<1x1xf32>
    %120 = vector.broadcast %119 : vector<1x1xf32> to vector<2x1xf32>
    %121 = arith.addf %118, %120 : vector<2x1xf32>
    %c0_67 = arith.constant 0 : index
    %c0_68 = arith.constant 0 : index
    %122 = vector.load %arg13[%c0_67, %c0_68] : memref<2x1xf32, #tpu.memory_space<vmem>>, vector<2x1xf32>
    tpu.vector_store %arg13[%c0_67, %c0_68], %121 {strides = array<i32>} : memref<2x1xf32, #tpu.memory_space<vmem>>, vector<2x1xf32>,
    return
  }
}

</mosaic_0001>

<llo_original>
// kernel: _fused_forward.1
$region0: #{_fused_forward.1}
  #allocation0 [shape = 'u32[]', space=smem, size = 0x4, offset = 0x4, fixed_abs, tag = 'smem constant byte address 0x4 - core index']
  #allocation1 [shape = 'u32[144,128]{1,0:T(1,128)}', space=vmem, size = 0x12000, scoped, tag = 'internal scratch']
  #allocation2 [shape = 'f32[1,1]{1,0:T(1,128)S(1)}', space=vmem, size = 0x200, scoped, tag = 'scoped memory for _fused_forward.1']
  #allocation3 [shape = 'f32[1,1]{1,0:T(1,128)S(1)}', space=vmem, size = 0x200, scoped, tag = 'scoped memory for _fused_forward.1']
  %s0 = inlined_call_operand.vmem [shape: f32[32,9], index: 0, kind: input, shape index: {}]
  %s1 = inlined_call_operand.vmem [shape: f32[9,32], index: 1, kind: input, shape index: {}]
  %s2 = inlined_call_operand.vmem [shape: f32[1,32], index: 2, kind: input, shape index: {}]
  %s3 = inlined_call_operand.vmem [shape: f32[2,32,32], index: 3, kind: input, shape index: {}]
  %s4 = inlined_call_operand.vmem [shape: f32[2,1,32], index: 4, kind: input, shape index: {}]
  %s5 = inlined_call_operand.vmem [shape: f32[2,32,48], index: 5, kind: input, shape index: {}]
  %s6 = inlined_call_operand.vmem [shape: f32[2,1,48], index: 6, kind: input, shape index: {}]
  %s7 = inlined_call_operand.vmem [shape: f32[16,32], index: 7, kind: input, shape index: {}]
  %s8 = inlined_call_operand.vmem [shape: f32[32,1], index: 8, kind: input, shape index: {}]
  %s9 = inlined_call_operand.<no memory space> [shape: f32[1,1], index: 9, kind: input, shape index: {}]
  %s10 = inlined_call_operand.vmem [shape: f32[2,16], index: 10, kind: input, shape index: {}]
  %s11 = inlined_call_operand.<no memory space> [shape: f32[1,1], index: 11, kind: input, shape index: {}]
  %s12 = inlined_call_operand.vmem [shape: f32[2], index: 12, kind: input, shape index: {}]
  %s13 = inlined_call_operand.vmem [shape: f32[2,1], index: 13, kind: output, shape index: {}]
  %s14 = sld [smem:[#allocation0]]
  $region66: #{_fused_forward.1} parent=0
    _
  %s16 = ssub.s32 1, %s14
  %s17 = scalar_select 0, %s16, %s14
  %v18 = vstv %s9
  %19 = vst [vmem:[#allocation2] sm:$0x1] %v18
  %v20 = vstv %s11
  %21 = vst [vmem:[#allocation3] sm:$0x1] %v20
  $region1: #{_fused_forward.1} parent=0
    #allocation4 [shape = 'u8[512]{0}', space=smem, size = 0x200, scoped, tag = 'input window, operand 12, single buffered']
    #allocation5 [shape = 's32[1]{0}', space=sflag, size = 0x4, scoped, tag = 'scoped memory for _fused_forward.1']
    %22 = vsyncpa [#allocation5], 0
    // Predicated region
    $region2: #{_fused_forward.1} parent=1 // pred_check
      _
    $region3: #{_fused_forward.1} parent=1 // pred_check_branch
      %24 = sbr.rel (0) target = $region5
    $region4: #{_fused_forward.1} parent=1 // pred_region
      _
    $region5: #{_fused_forward.1} parent=1 // pred_fallthru
      _
    // Predicated region
    $region6: #{_fused_forward.1} parent=1 // pred_check
      _
    $region7: #{_fused_forward.1} parent=1 // pred_check_branch
      %26 = sbr.rel (0) target = $region9
    $region8: #{_fused_forward.1} parent=1 // pred_region
      _
    $region9: #{_fused_forward.1} parent=1 // pred_fallthru
      _
    // Predicated region
    $region10: #{_fused_forward.1} parent=1 // pred_check
      _
    $region11: #{_fused_forward.1} parent=1 // pred_check_branch
      %28 = sbr.rel (0) target = $region13
    $region12: #{_fused_forward.1} parent=1 // pred_region
      _
    $region13: #{_fused_forward.1} parent=1 // pred_fallthru
      _
    // Predicated region
    $region14: #{_fused_forward.1} parent=1 // pred_check
      _
    $region15: #{_fused_forward.1} parent=1 // pred_check_branch
      %30 = sbr.rel (0) target = $region17
    $region16: #{_fused_forward.1} parent=1 // pred_region
      _
    $region17: #{_fused_forward.1} parent=1 // pred_fallthru
      _
    // Predicated region
    $region18: #{_fused_forward.1} parent=1 // pred_check
      _
    $region19: #{_fused_forward.1} parent=1 // pred_check_branch
      %32 = sbr.rel (0) target = $region21
    $region20: #{_fused_forward.1} parent=1 // pred_region
      _
    $region21: #{_fused_forward.1} parent=1 // pred_fallthru
      _
    // Predicated region
    $region22: #{_fused_forward.1} parent=1 // pred_check
      _
    $region23: #{_fused_forward.1} parent=1 // pred_check_branch
      %34 = sbr.rel (0) target = $region25
    $region24: #{_fused_forward.1} parent=1 // pred_region
      _
    $region25: #{_fused_forward.1} parent=1 // pred_fallthru
      _
    // Predicated region
    $region26: #{_fused_forward.1} parent=1 // pred_check
      _
    $region27: #{_fused_forward.1} parent=1 // pred_check_branch
      %36 = sbr.rel (0) target = $region29
    $region28: #{_fused_forward.1} parent=1 // pred_region
      _
    $region29: #{_fused_forward.1} parent=1 // pred_fallthru
      _
    // Predicated region
    $region30: #{_fused_forward.1} parent=1 // pred_check
      _
    $region31: #{_fused_forward.1} parent=1 // pred_check_branch
      %38 = sbr.rel (0) target = $region33
    $region32: #{_fused_forward.1} parent=1 // pred_region
      _
    $region33: #{_fused_forward.1} parent=1 // pred_fallthru
      _
    // Predicated region
    $region34: #{_fused_forward.1} parent=1 // pred_check
      _
    $region35: #{_fused_forward.1} parent=1 // pred_check_branch
      %40 = sbr.rel (0) target = $region37
    $region36: #{_fused_forward.1} parent=1 // pred_region
      _
    $region37: #{_fused_forward.1} parent=1 // pred_fallthru
      _
    // Predicated region
    $region38: #{_fused_forward.1} parent=1 // pred_check
      _
    $region39: #{_fused_forward.1} parent=1 // pred_check_branch
      %42 = sbr.rel (0) target = $region41
    $region40: #{_fused_forward.1} parent=1 // pred_region
      _
    $region41: #{_fused_forward.1} parent=1 // pred_fallthru
      _
    // Predicated region
    $region42: #{_fused_forward.1} parent=1 // pred_check
      _
    $region43: #{_fused_forward.1} parent=1 // pred_check_branch
      %44 = sbr.rel (0) target = $region45
    $region44: #{_fused_forward.1} parent=1 // pred_region
      _
    $region45: #{_fused_forward.1} parent=1 // pred_fallthru
      _
    // Predicated region
    $region46: #{_fused_forward.1} parent=1 // pred_check
      _
    $region47: #{_fused_forward.1} parent=1 // pred_check_branch
      %46 = sbr.rel (0) target = $region49
    $region48: #{_fused_forward.1} parent=1 // pred_region
      _
    $region49: #{_fused_forward.1} parent=1 // pred_fallthru
      _
    // Predicated region
    $region50: #{_fused_forward.1} parent=1 // pred_check
      _
    $region51: #{_fused_forward.1} parent=1 // pred_check_branch
      %48 = sbr.rel (0) target = $region53
    $region52: #{_fused_forward.1} parent=1 // pred_region
      %s50 = ssub.s32 16, 16
      %51 = vsyncadd [#allocation5], %s50
      %s53 = sshll.u32 %s12, 4
      %s54 = int_to_ptr.vmem [resolvable:$true] %s53
      %56 = dma.vmem_to_smem %s54, 16, [#allocation4], [#allocation5]
    $region53: #{_fused_forward.1} parent=1 // pred_fallthru
      _
    // Predicated region
    $region54: #{_fused_forward.1} parent=1 // pred_check
      _
    $region55: #{_fused_forward.1} parent=1 // pred_check_branch
      %58 = sbr.rel (0) target = $region57
    $region56: #{_fused_forward.1} parent=1 // pred_region
      %59 = dma.done [#allocation5], 16
    $region57: #{_fused_forward.1} parent=1 // pred_fallthru
      _
    %60 = sfence
    %v61 = vld [vmem:[%s0] sm:$0xff]
    %v62 = vld [vmem:[%s0 + $0x8] sm:$0xff]
    %v63 = vld [vmem:[%s0 + $0x10] sm:$0xff]
    %v64 = vld [vmem:[%s0 + $0x18] sm:$0xff]
    %v65 = vld [vmem:[%s1] sm:$0xff]
    %v66 = vld [vmem:[%s1 + $0x8] sm:$0x1]
    %v67 = vld [vmem:[%s2] sm:$0x1]
    %v69 = vlaneseq
    %v70 = vshrl.u32 %v69, 7
    %v71 = vsub.s32 0, %v70
    %v72 = vrot.slane %v67, %v71
    %vm74 = vcmask 72704
    %v76 = vsel %vm74, %v61, 0
    %v79 = vsel %vm74, %v62, 0
    %v82 = vsel %vm74, %v63, 0
    %v85 = vsel %vm74, %v64, 0
    %vm87 = vcmask 1040384
    %v89 = vsel %vm87, %v66, 0
    %91 = vmatprep.subr.mxu0 0.0
    %92 = vmatpush1.msra.mxu0 %v65
    %93 = vmatprep.subr.mxu0 0.0
    %94 = vmatpush1.msra.mxu0 %v89
    %95 = vmatprep.subr.mxu0 0.0
    %96 = vmatpush1.msra.mxu0 0.0
    %97 = vmatprep.subr.mxu0 0.0
    %98 = vmatpush1.msra.mxu0 0.0
    %99 = vmatprep.subr.mxu0 0.0
    %100 = vmatpush1.msra.mxu0 0.0
    %101 = vmatprep.subr.mxu0 0.0
    %102 = vmatpush1.msra.mxu0 0.0
    %103 = vmatprep.subr.mxu0 0.0
    %104 = vmatpush1.msra.mxu0 0.0
    %105 = vmatprep.subr.mxu0 0.0
    %106 = vmatpush1.msra.mxu0 0.0
    %107 = vmatprep.subr.mxu0 0.0
    %108 = vmatpush1.msra.mxu0 0.0
    %109 = vmatprep.subr.mxu0 0.0
    %110 = vmatpush1.msra.mxu0 0.0
    %111 = vmatprep.subr.mxu0 0.0
    %112 = vmatpush1.msra.mxu0 0.0
    %113 = vmatprep.subr.mxu0 0.0
    %114 = vmatpush1.msra.mxu0 0.0
    %115 = vmatprep.subr.mxu0 0.0
    %116 = vmatpush1.msra.mxu0 0.0
    %117 = vmatprep.subr.mxu0 0.0
    %118 = vmatpush1.msra.mxu0 0.0
    %119 = vmatprep.subr.mxu0 0.0
    %120 = vmatpush1.msra.mxu0 0.0
    %121 = vmatprep.subr.mxu0 0.0
    %122 = vmatpush1.msra.mxu0 0.0
    %123 = vmatprep.subr.mxu0 0.0
    %124 = vmatpush1.msra.mxu0 0.0
    %125 = vmatprep.subr.mxu0 0.0
    %126 = vmatpush1.msra.mxu0 0.0
    %127 = vmatprep.subr.mxu0 0.0
    %128 = vmatpush1.msra.mxu0 0.0
    %129 = vmatprep.subr.mxu0 0.0
    %130 = vmatpush1.msra.mxu0 0.0
    %131 = vmatprep.subr.mxu0 0.0
    %132 = vmatpush1.msra.mxu0 0.0
    %133 = vmatprep.subr.mxu0 0.0
    %134 = vmatpush1.msra.mxu0 0.0
    %135 = vmatprep.subr.mxu0 0.0
    %136 = vmatpush1.msra.mxu0 0.0
    %137 = vmatprep.subr.mxu0 0.0
    %138 = vmatpush1.msra.mxu0 0.0
    %139 = vmatprep.subr.mxu0 0.0
    %140 = vmatpush1.msra.mxu0 0.0
    %141 = vmatprep.subr.mxu0 0.0
    %142 = vmatpush1.msra.mxu0 0.0
    %143 = vmatprep.subr.mxu0 0.0
    %144 = vmatpush1.msra.mxu0 0.0
    %145 = vmatprep.subr.mxu0 0.0
    %146 = vmatpush1.msra.mxu0 0.0
    %147 = vmatprep.subr.mxu0 0.0
    %148 = vmatpush1.msra.mxu0 0.0
    %149 = vmatprep.subr.mxu0 0.0
    %150 = vmatpush1.msra.mxu0 0.0
    %151 = vmatprep.subr.mxu0 0.0
    %152 = vmatpush1.msra.mxu0 0.0
    %153 = vmatprep.subr.mxu0 0.0
    %154 = vmatpush1.msra.mxu0 0.0
    %155 = vmatprep.mubr.f32.mxu0 0.0
    %156 = vmatmul.mubr.f32.gmra.mrb[0].mxu0 %v76
    %v157 = vpop.f32.mrb[0].mxu0
    %v158 = vadd.f32 %v72, %v157
    %v159 = vpop.f32.mrb[0].mxu0
    %160 = vmatprep.mubr.f32.mxu0 0.0
    %161 = vmatmul.mubr.f32.gmra.mrb[0].mxu0 %v79
    %v162 = vpop.f32.mrb[0].mxu0
    %v163 = vadd.f32 %v72, %v162
    %v164 = vpop.f32.mrb[0].mxu0
    %165 = vmatprep.mubr.f32.mxu0 0.0
    %166 = vmatmul.mubr.f32.gmra.mrb[0].mxu0 %v82
    %v167 = vpop.f32.mrb[0].mxu0
    %v168 = vadd.f32 %v72, %v167
    %v169 = vpop.f32.mrb[0].mxu0
    %170 = vmatprep.mubr.f32.mxu0 0.0
    %171 = vmatmul.mubr.f32.gmra.mrb[0].mxu0 %v85
    %v172 = vpop.f32.mrb[0].mxu0
    %v173 = vadd.f32 %v72, %v172
    %v174 = vpop.f32.mrb[0].mxu0
    %175 = vdwg.mxu0
    %vm176 = vcmp.ge.f32.partialorder %v158, 0.0
    %vm177 = vcmp.ge.f32.partialorder %v163, 0.0
    %vm178 = vcmp.ge.f32.partialorder %v168, 0.0
    %vm179 = vcmp.ge.f32.partialorder %v173, 0.0
    %v180 = vmul.f32 %v158, 0.01
    %v181 = vmul.f32 %v163, 0.01
    %v182 = vmul.f32 %v168, 0.01
    %v183 = vmul.f32 %v173, 0.01
    %v184 = vsel %vm176, %v158, %v180
    %v185 = vsel %vm177, %v163, %v181
    %v186 = vsel %vm178, %v168, %v182
    %v187 = vsel %vm179, %v173, %v183
    %v188 = vld [vmem:[%s3] sm:$0xff]
    %v189 = vld [vmem:[%s3 + $0x8] sm:$0xff]
    %v190 = vld [vmem:[%s3 + $0x10] sm:$0xff]
    %v191 = vld [vmem:[%s3 + $0x18] sm:$0xff]
    %v192 = vld [vmem:[%s4] sm:$0x1]
    %v194 = vlaneseq
    %v195 = vshrl.u32 %v194, 7
    %v196 = vsub.s32 0, %v195
    %v197 = vrot.slane %v192, %v196
    %vm199 = vcmask 261120
    %v201 = vsel %vm199, %v184, 0
    %v204 = vsel %vm199, %v185, 0
    %v207 = vsel %vm199, %v186, 0
    %v210 = vsel %vm199, %v187, 0
    %212 = vmatprep.subr.mxu0 0.0
    %213 = vmatpush1.msra.mxu0 %v188
    %214 = vmatprep.subr.mxu0 0.0
    %215 = vmatpush1.msra.mxu0 %v189
    %216 = vmatprep.subr.mxu0 0.0
    %217 = vmatpush1.msra.mxu0 %v190
    %218 = vmatprep.subr.mxu0 0.0
    %219 = vmatpush1.msra.mxu0 %v191
    %220 = vmatprep.subr.mxu0 0.0
    %221 = vmatpush1.msra.mxu0 0.0
    %222 = vmatprep.subr.mxu0 0.0
    %223 = vmatpush1.msra.mxu0 0.0
    %224 = vmatprep.subr.mxu0 0.0
    %225 = vmatpush1.msra.mxu0 0.0
    %226 = vmatprep.subr.mxu0 0.0
    %227 = vmatpush1.msra.mxu0 0.0
    %228 = vmatprep.subr.mxu0 0.0
    %229 = vmatpush1.msra.mxu0 0.0
    %230 = vmatprep.subr.mxu0 0.0
    %231 = vmatpush1.msra.mxu0 0.0
    %232 = vmatprep.subr.mxu0 0.0
    %233 = vmatpush1.msra.mxu0 0.0
    %234 = vmatprep.subr.mxu0 0.0
    %235 = vmatpush1.msra.mxu0 0.0
    %236 = vmatprep.subr.mxu0 0.0
    %237 = vmatpush1.msra.mxu0 0.0
    %238 = vmatprep.subr.mxu0 0.0
    %239 = vmatpush1.msra.mxu0 0.0
    %240 = vmatprep.subr.mxu0 0.0
    %241 = vmatpush1.msra.mxu0 0.0
    %242 = vmatprep.subr.mxu0 0.0
    %243 = vmatpush1.msra.mxu0 0.0
    %244 = vmatprep.subr.mxu0 0.0
    %245 = vmatpush1.msra.mxu0 0.0
    %246 = vmatprep.subr.mxu0 0.0
    %247 = vmatpush1.msra.mxu0 0.0
    %248 = vmatprep.subr.mxu0 0.0
    %249 = vmatpush1.msra.mxu0 0.0
    %250 = vmatprep.subr.mxu0 0.0
    %251 = vmatpush1.msra.mxu0 0.0
    %252 = vmatprep.subr.mxu0 0.0
    %253 = vmatpush1.msra.mxu0 0.0
    %254 = vmatprep.subr.mxu0 0.0
    %255 = vmatpush1.msra.mxu0 0.0
    %256 = vmatprep.subr.mxu0 0.0
    %257 = vmatpush1.msra.mxu0 0.0
    %258 = vmatprep.subr.mxu0 0.0
    %259 = vmatpush1.msra.mxu0 0.0
    %260 = vmatprep.subr.mxu0 0.0
    %261 = vmatpush1.msra.mxu0 0.0
    %262 = vmatprep.subr.mxu0 0.0
    %263 = vmatpush1.msra.mxu0 0.0
    %264 = vmatprep.subr.mxu0 0.0
    %265 = vmatpush1.msra.mxu0 0.0
    %266 = vmatprep.subr.mxu0 0.0
    %267 = vmatpush1.msra.mxu0 0.0
    %268 = vmatprep.subr.mxu0 0.0
    %269 = vmatpush1.msra.mxu0 0.0
    %270 = vmatprep.subr.mxu0 0.0
    %271 = vmatpush1.msra.mxu0 0.0
    %272 = vmatprep.subr.mxu0 0.0
    %273 = vmatpush1.msra.mxu0 0.0
    %274 = vmatprep.subr.mxu0 0.0
    %275 = vmatpush1.msra.mxu0 0.0
    %276 = vmatprep.mubr.f32.mxu0 0.0
    %277 = vmatmul.mubr.f32.gmra.mrb[0].mxu0 %v201
    %v278 = vpop.f32.mrb[0].mxu0
    %v279 = vadd.f32 %v197, %v278
    %v280 = vpop.f32.mrb[0].mxu0
    %281 = vmatprep.mubr.f32.mxu0 0.0
    %282 = vmatmul.mubr.f32.gmra.mrb[0].mxu0 %v204
    %v283 = vpop.f32.mrb[0].mxu0
    %v284 = vadd.f32 %v197, %v283
    %v285 = vpop.f32.mrb[0].mxu0
    %286 = vmatprep.mubr.f32.mxu0 0.0
    %287 = vmatmul.mubr.f32.gmra.mrb[0].mxu0 %v207
    %v288 = vpop.f32.mrb[0].mxu0
    %v289 = vadd.f32 %v197, %v288
    %v290 = vpop.f32.mrb[0].mxu0
    %291 = vmatprep.mubr.f32.mxu0 0.0
    %292 = vmatmul.mubr.f32.gmra.mrb[0].mxu0 %v210
    %v293 = vpop.f32.mrb[0].mxu0
    %v294 = vadd.f32 %v197, %v293
    %v295 = vpop.f32.mrb[0].mxu0
    %296 = vdwg.mxu0
    %vm297 = vcmp.ge.f32.partialorder %v279, 0.0
    %vm298 = vcmp.ge.f32.partialorder %v284, 0.0
    %vm299 = vcmp.ge.f32.partialorder %v289, 0.0
    %vm300 = vcmp.ge.f32.partialorder %v294, 0.0
    %v301 = vmul.f32 %v279, 0.01
    %v302 = vmul.f32 %v284, 0.01
    %v303 = vmul.f32 %v289, 0.01
    %v304 = vmul.f32 %v294, 0.01
    %v305 = vsel %vm297, %v279, %v301
    %v306 = vsel %vm298, %v284, %v302
    %v307 = vsel %vm299, %v289, %v303
    %v308 = vsel %vm300, %v294, %v304
    %v309 = vld [vmem:[%s5] sm:$0xff]
    %v310 = vld [vmem:[%s5 + $0x8] sm:$0xff]
    %v311 = vld [vmem:[%s5 + $0x10] sm:$0xff]
    %v312 = vld [vmem:[%s5 + $0x18] sm:$0xff]
    %v313 = vld [vmem:[%s6] sm:$0x1]
    %v315 = vlaneseq
    %v316 = vshrl.u32 %v315, 7
    %v317 = vsub.s32 0, %v316
    %v318 = vrot.slane %v313, %v317
    %v321 = vsel %vm199, %v305, 0
    %v324 = vsel %vm199, %v306, 0
    %v327 = vsel %vm199, %v307, 0
    %v330 = vsel %vm199, %v308, 0
    %332 = vmatprep.subr.mxu0 0.0
    %333 = vmatpush1.msra.mxu0 %v309
    %334 = vmatprep.subr.mxu0 0.0
    %335 = vmatpush1.msra.mxu0 %v310
    %336 = vmatprep.subr.mxu0 0.0
    %337 = vmatpush1.msra.mxu0 %v311
    %338 = vmatprep.subr.mxu0 0.0
    %339 = vmatpush1.msra.mxu0 %v312
    %340 = vmatprep.subr.mxu0 0.0
    %341 = vmatpush1.msra.mxu0 0.0
    %342 = vmatprep.subr.mxu0 0.0
    %343 = vmatpush1.msra.mxu0 0.0
    %344 = vmatprep.subr.mxu0 0.0
    %345 = vmatpush1.msra.mxu0 0.0
    %346 = vmatprep.subr.mxu0 0.0
    %347 = vmatpush1.msra.mxu0 0.0
    %348 = vmatprep.subr.mxu0 0.0
    %349 = vmatpush1.msra.mxu0 0.0
    %350 = vmatprep.subr.mxu0 0.0
    %351 = vmatpush1.msra.mxu0 0.0
    %352 = vmatprep.subr.mxu0 0.0
    %353 = vmatpush1.msra.mxu0 0.0
    %354 = vmatprep.subr.mxu0 0.0
    %355 = vmatpush1.msra.mxu0 0.0
    %356 = vmatprep.subr.mxu0 0.0
    %357 = vmatpush1.msra.mxu0 0.0
    %358 = vmatprep.subr.mxu0 0.0
    %359 = vmatpush1.msra.mxu0 0.0
    %360 = vmatprep.subr.mxu0 0.0
    %361 = vmatpush1.msra.mxu0 0.0
    %362 = vmatprep.subr.mxu0 0.0
    %363 = vmatpush1.msra.mxu0 0.0
    %364 = vmatprep.subr.mxu0 0.0
    %365 = vmatpush1.msra.mxu0 0.0
    %366 = vmatprep.subr.mxu0 0.0
    %367 = vmatpush1.msra.mxu0 0.0
    %368 = vmatprep.subr.mxu0 0.0
    %369 = vmatpush1.msra.mxu0 0.0
    %370 = vmatprep.subr.mxu0 0.0
    %371 = vmatpush1.msra.mxu0 0.0
    %372 = vmatprep.subr.mxu0 0.0
    %373 = vmatpush1.msra.mxu0 0.0
    %374 = vmatprep.subr.mxu0 0.0
    %375 = vmatpush1.msra.mxu0 0.0
    %376 = vmatprep.subr.mxu0 0.0
    %377 = vmatpush1.msra.mxu0 0.0
    %378 = vmatprep.subr.mxu0 0.0
    %379 = vmatpush1.msra.mxu0 0.0
    %380 = vmatprep.subr.mxu0 0.0
    %381 = vmatpush1.msra.mxu0 0.0
    %382 = vmatprep.subr.mxu0 0.0
    %383 = vmatpush1.msra.mxu0 0.0
    %384 = vmatprep.subr.mxu0 0.0
    %385 = vmatpush1.msra.mxu0 0.0
    %386 = vmatprep.subr.mxu0 0.0
    %387 = vmatpush1.msra.mxu0 0.0
    %388 = vmatprep.subr.mxu0 0.0
    %389 = vmatpush1.msra.mxu0 0.0
    %390 = vmatprep.subr.mxu0 0.0
    %391 = vmatpush1.msra.mxu0 0.0
    %392 = vmatprep.subr.mxu0 0.0
    %393 = vmatpush1.msra.mxu0 0.0
    %394 = vmatprep.subr.mxu0 0.0
    %395 = vmatpush1.msra.mxu0 0.0
    %396 = vmatprep.mubr.f32.mxu0 0.0
    %397 = vmatmul.mubr.f32.gmra.mrb[0].mxu0 %v321
    %v398 = vpop.f32.mrb[0].mxu0
    %v399 = vadd.f32 %v318, %v398
    %v400 = vpop.f32.mrb[0].mxu0
    %401 = vmatprep.mubr.f32.mxu0 0.0
    %402 = vmatmul.mubr.f32.gmra.mrb[0].mxu0 %v324
    %v403 = vpop.f32.mrb[0].mxu0
    %v404 = vadd.f32 %v318, %v403
    %v405 = vpop.f32.mrb[0].mxu0
    %406 = vmatprep.mubr.f32.mxu0 0.0
    %407 = vmatmul.mubr.f32.gmra.mrb[0].mxu0 %v327
    %v408 = vpop.f32.mrb[0].mxu0
    %v409 = vadd.f32 %v318, %v408
    %v410 = vpop.f32.mrb[0].mxu0
    %411 = vmatprep.mubr.f32.mxu0 0.0
    %412 = vmatmul.mubr.f32.gmra.mrb[0].mxu0 %v330
    %v413 = vpop.f32.mrb[0].mxu0
    %v414 = vadd.f32 %v318, %v413
    %v415 = vpop.f32.mrb[0].mxu0
    %416 = vdwg.mxu0
    %421 = vrot.lane.b32.xlu0 %v399, 120
    %v422 = vpop.permute.xlu0 %421
    %423 = vrot.lane.b32.xlu0 %v404, 120
    %v424 = vpop.permute.xlu0 %423
    %425 = vrot.lane.b32.xlu0 %v409, 120
    %v426 = vpop.permute.xlu0 %425
    %427 = vrot.lane.b32.xlu0 %v414, 120
    %v428 = vpop.permute.xlu0 %427
    %vm429 = vcmask 64512
    %v430 = vsel %vm429, %v399, 0
    %v432 = vsel %vm429, %v404, 0
    %v434 = vsel %vm429, %v409, 0
    %v436 = vsel %vm429, %v414, 0
    %v438 = vsel %vm429, %v422, 0
    %v440 = vsel %vm429, %v424, 0
    %v442 = vsel %vm429, %v426, 0
    %v444 = vsel %vm429, %v428, 0
    %446 = vmatprep.subr.mxu0 0.0
    %447 = vmatpush1.xpose.msra.mxu0 %v438
    %448 = vmatprep.subr.mxu0 0.0
    %449 = vmatpush1.xpose.msra.mxu0 %v440
    %450 = vmatprep.subr.mxu0 0.0
    %451 = vmatpush1.xpose.msra.mxu0 %v442
    %452 = vmatprep.subr.mxu0 0.0
    %453 = vmatpush1.xpose.msra.mxu0 %v444
    %454 = vmatprep.subr.mxu0 0.0
    %455 = vmatpush1.xpose.msra.mxu0 0.0
    %456 = vmatprep.subr.mxu0 0.0
    %457 = vmatpush1.xpose.msra.mxu0 0.0
    %458 = vmatprep.subr.mxu0 0.0
    %459 = vmatpush1.xpose.msra.mxu0 0.0
    %460 = vmatprep.subr.mxu0 0.0
    %461 = vmatpush1.xpose.msra.mxu0 0.0
    %462 = vmatprep.subr.mxu0 0.0
    %463 = vmatpush1.xpose.msra.mxu0 0.0
    %464 = vmatprep.subr.mxu0 0.0
    %465 = vmatpush1.xpose.msra.mxu0 0.0
    %466 = vmatprep.subr.mxu0 0.0
    %467 = vmatpush1.xpose.msra.mxu0 0.0
    %468 = vmatprep.subr.mxu0 0.0
    %469 = vmatpush1.xpose.msra.mxu0 0.0
    %470 = vmatprep.subr.mxu0 0.0
    %471 = vmatpush1.xpose.msra.mxu0 0.0
    %472 = vmatprep.subr.mxu0 0.0
    %473 = vmatpush1.xpose.msra.mxu0 0.0
    %474 = vmatprep.subr.mxu0 0.0
    %475 = vmatpush1.xpose.msra.mxu0 0.0
    %476 = vmatprep.subr.mxu0 0.0
    %477 = vmatpush1.xpose.msra.mxu0 0.0
    %478 = vmatprep.subr.mxu0 0.0
    %479 = vmatpush1.xpose.msra.mxu0 0.0
    %480 = vmatprep.subr.mxu0 0.0
    %481 = vmatpush1.xpose.msra.mxu0 0.0
    %482 = vmatprep.subr.mxu0 0.0
    %483 = vmatpush1.xpose.msra.mxu0 0.0
    %484 = vmatprep.subr.mxu0 0.0
    %485 = vmatpush1.xpose.msra.mxu0 0.0
    %486 = vmatprep.subr.mxu0 0.0
    %487 = vmatpush1.xpose.msra.mxu0 0.0
    %488 = vmatprep.subr.mxu0 0.0
    %489 = vmatpush1.xpose.msra.mxu0 0.0
    %490 = vmatprep.subr.mxu0 0.0
    %491 = vmatpush1.xpose.msra.mxu0 0.0
    %492 = vmatprep.subr.mxu0 0.0
    %493 = vmatpush1.xpose.msra.mxu0 0.0
    %494 = vmatprep.subr.mxu0 0.0
    %495 = vmatpush1.xpose.msra.mxu0 0.0
    %496 = vmatprep.subr.mxu0 0.0
    %497 = vmatpush1.xpose.msra.mxu0 0.0
    %498 = vmatprep.subr.mxu0 0.0
    %499 = vmatpush1.xpose.msra.mxu0 0.0
    %500 = vmatprep.subr.mxu0 0.0
    %501 = vmatpush1.xpose.msra.mxu0 0.0
    %502 = vmatprep.subr.mxu0 0.0
    %503 = vmatpush1.xpose.msra.mxu0 0.0
    %504 = vmatprep.subr.mxu0 0.0
    %505 = vmatpush1.xpose.msra.mxu0 0.0
    %506 = vmatprep.subr.mxu0 0.0
    %507 = vmatpush1.xpose.msra.mxu0 0.0
    %508 = vmatprep.subr.mxu0 0.0
    %509 = vmatpush1.xpose.msra.mxu0 0.0
    %510 = vmatprep.mubr.f32.mxu0 0.0
    %511 = vmatmul.mubr.f32.gmra.mrb[0].mxu0 %v430
    %v512 = vpop.f32.mrb[0].mxu0
    %v513 = vadd.f32 0.0, %v512
    %v514 = vpop.f32.mrb[0].mxu0
    %515 = vmatprep.mubr.f32.mxu0 0.0
    %516 = vmatmul.mubr.f32.gmra.mrb[0].mxu0 %v432
    %v517 = vpop.f32.mrb[0].mxu0
    %v518 = vadd.f32 0.0, %v517
    %v519 = vpop.f32.mrb[0].mxu0
    %520 = vmatprep.mubr.f32.mxu0 0.0
    %521 = vmatmul.mubr.f32.gmra.mrb[0].mxu0 %v434
    %v522 = vpop.f32.mrb[0].mxu0
    %v523 = vadd.f32 0.0, %v522
    %v524 = vpop.f32.mrb[0].mxu0
    %525 = vmatprep.mubr.f32.mxu0 0.0
    %526 = vmatmul.mubr.f32.gmra.mrb[0].mxu0 %v436
    %v527 = vpop.f32.mrb[0].mxu0
    %v528 = vadd.f32 0.0, %v527
    %v529 = vpop.f32.mrb[0].mxu0
    %530 = vdwg.mxu0
    %v531 = vlaneseq
    %v532 = vshrl.u32 %v531, 7
    %v533 = vadd.s32 %v532, 8
    %v534 = vadd.s32 %v532, 16
    %v535 = vadd.s32 %v532, 24
    %v536 = vshra.s32 %v532, 4
    %v537 = vshra.s32 %v533, 4
    %v538 = vshra.s32 %v534, 4
    %v539 = vshra.s32 %v535, 4
    %v540 = vlaneseq
    %v541 = vand.u32 %v540, 127
    %v542 = vshra.s32 %v541, 4
    %vm543 = vcmp.eq.s32.totalorder %v536, %v542
    %vm544 = vcmp.eq.s32.totalorder %v537, %v542
    %vm545 = vcmp.eq.s32.totalorder %v538, %v542
    %vm546 = vcmp.eq.s32.totalorder %v539, %v542
    %v547 = vsel %vm543, %v513, -1e+30
    %v548 = vsel %vm544, %v518, -1e+30
    %v549 = vsel %vm545, %v523, -1e+30
    %v550 = vsel %vm546, %v528, -1e+30
    %v551 = vsel %vm199, %v547, -inf
    %552 = vmax.xlane.f32.xlu0 %v551
    %v553 = vpop.xlane.xlu0 %552
    %v554 = vsel %vm199, %v548, -inf
    %555 = vmax.xlane.f32.xlu0 %v554
    %v556 = vpop.xlane.xlu0 %555
    %v557 = vsel %vm199, %v549, -inf
    %558 = vmax.xlane.f32.xlu0 %v557
    %v559 = vpop.xlane.xlu0 %558
    %v560 = vsel %vm199, %v550, -inf
    %561 = vmax.xlane.f32.xlu0 %v560
    %v562 = vpop.xlane.xlu0 %561
    %v563 = vsub.f32 %v547, %v553
    %v564 = vsub.f32 %v548, %v556
    %v565 = vsub.f32 %v549, %v559
    %v566 = vsub.f32 %v550, %v562
    %v567 = vmul.f32 %v563, 1.442695
    %v568 = vpow.pop %v567
    %v569 = vmul.f32 %v564, 1.442695
    %v570 = vpow.pop %v569
    %v571 = vmul.f32 %v565, 1.442695
    %v572 = vpow.pop %v571
    %v573 = vmul.f32 %v566, 1.442695
    %v574 = vpow.pop %v573
    %v575 = vsel %vm199, %v568, 0.0
    %576 = vadd.xlane.f32.xlu0 %v575
    %v577 = vpop.xlane.xlu0 %576
    %v578 = vsel %vm199, %v570, 0.0
    %579 = vadd.xlane.f32.xlu0 %v578
    %v580 = vpop.xlane.xlu0 %579
    %v581 = vsel %vm199, %v572, 0.0
    %582 = vadd.xlane.f32.xlu0 %v581
    %v583 = vpop.xlane.xlu0 %582
    %v584 = vsel %vm199, %v574, 0.0
    %585 = vadd.xlane.f32.xlu0 %v584
    %v586 = vpop.xlane.xlu0 %585
    %v587 = vrcp.pop %v577
    %v588 = vrcp.pop %v580
    %v589 = vrcp.pop %v583
    %v590 = vrcp.pop %v586
    %v591 = vmul.f32 %v568, %v587
    %v592 = vmul.f32 %v570, %v588
    %v593 = vmul.f32 %v572, %v589
    %v594 = vmul.f32 %v574, %v590
    %595 = vrot.lane.b32.xlu0 %v399, 112
    %v596 = vpop.permute.xlu0 %595
    %597 = vrot.lane.b32.xlu0 %v404, 112
    %v598 = vpop.permute.xlu0 %597
    %599 = vrot.lane.b32.xlu0 %v409, 112
    %v600 = vpop.permute.xlu0 %599
    %601 = vrot.lane.b32.xlu0 %v414, 112
    %v602 = vpop.permute.xlu0 %601
    %v608 = vsel %vm199, %v591, 0
    %v611 = vsel %vm199, %v592, 0
    %v614 = vsel %vm199, %v593, 0
    %v617 = vsel %vm199, %v594, 0
    %619 = vmatprep.subr.mxu0 0.0
    %620 = vmatpush1.msra.mxu0 %v596
    %621 = vmatprep.subr.mxu0 0.0
    %622 = vmatpush1.msra.mxu0 %v598
    %623 = vmatprep.subr.mxu0 0.0
    %624 = vmatpush1.msra.mxu0 %v600
    %625 = vmatprep.subr.mxu0 0.0
    %626 = vmatpush1.msra.mxu0 %v602
    %627 = vmatprep.subr.mxu0 0.0
    %628 = vmatpush1.msra.mxu0 0.0
    %629 = vmatprep.subr.mxu0 0.0
    %630 = vmatpush1.msra.mxu0 0.0
    %631 = vmatprep.subr.mxu0 0.0
    %632 = vmatpush1.msra.mxu0 0.0
    %633 = vmatprep.subr.mxu0 0.0
    %634 = vmatpush1.msra.mxu0 0.0
    %635 = vmatprep.subr.mxu0 0.0
    %636 = vmatpush1.msra.mxu0 0.0
    %637 = vmatprep.subr.mxu0 0.0
    %638 = vmatpush1.msra.mxu0 0.0
    %639 = vmatprep.subr.mxu0 0.0
    %640 = vmatpush1.msra.mxu0 0.0
    %641 = vmatprep.subr.mxu0 0.0
    %642 = vmatpush1.msra.mxu0 0.0
    %643 = vmatprep.subr.mxu0 0.0
    %644 = vmatpush1.msra.mxu0 0.0
    %645 = vmatprep.subr.mxu0 0.0
    %646 = vmatpush1.msra.mxu0 0.0
    %647 = vmatprep.subr.mxu0 0.0
    %648 = vmatpush1.msra.mxu0 0.0
    %649 = vmatprep.subr.mxu0 0.0
    %650 = vmatpush1.msra.mxu0 0.0
    %651 = vmatprep.subr.mxu0 0.0
    %652 = vmatpush1.msra.mxu0 0.0
    %653 = vmatprep.subr.mxu0 0.0
    %654 = vmatpush1.msra.mxu0 0.0
    %655 = vmatprep.subr.mxu0 0.0
    %656 = vmatpush1.msra.mxu0 0.0
    %657 = vmatprep.subr.mxu0 0.0
    %658 = vmatpush1.msra.mxu0 0.0
    %659 = vmatprep.subr.mxu0 0.0
    %660 = vmatpush1.msra.mxu0 0.0
    %661 = vmatprep.subr.mxu0 0.0
    %662 = vmatpush1.msra.mxu0 0.0
    %663 = vmatprep.subr.mxu0 0.0
    %664 = vmatpush1.msra.mxu0 0.0
    %665 = vmatprep.subr.mxu0 0.0
    %666 = vmatpush1.msra.mxu0 0.0
    %667 = vmatprep.subr.mxu0 0.0
    %668 = vmatpush1.msra.mxu0 0.0
    %669 = vmatprep.subr.mxu0 0.0
    %670 = vmatpush1.msra.mxu0 0.0
    %671 = vmatprep.subr.mxu0 0.0
    %672 = vmatpush1.msra.mxu0 0.0
    %673 = vmatprep.subr.mxu0 0.0
    %674 = vmatpush1.msra.mxu0 0.0
    %675 = vmatprep.subr.mxu0 0.0
    %676 = vmatpush1.msra.mxu0 0.0
    %677 = vmatprep.subr.mxu0 0.0
    %678 = vmatpush1.msra.mxu0 0.0
    %679 = vmatprep.subr.mxu0 0.0
    %680 = vmatpush1.msra.mxu0 0.0
    %681 = vmatprep.subr.mxu0 0.0
    %682 = vmatpush1.msra.mxu0 0.0
    %683 = vmatprep.mubr.f32.mxu0 0.0
    %684 = vmatmul.mubr.f32.gmra.mrb[0].mxu0 %v608
    %v685 = vpop.f32.mrb[0].mxu0
    %v686 = vadd.f32 0.0, %v685
    %v687 = vpop.f32.mrb[0].mxu0
    %688 = vmatprep.mubr.f32.mxu0 0.0
    %689 = vmatmul.mubr.f32.gmra.mrb[0].mxu0 %v611
    %v690 = vpop.f32.mrb[0].mxu0
    %v691 = vadd.f32 0.0, %v690
    %v692 = vpop.f32.mrb[0].mxu0
    %693 = vmatprep.mubr.f32.mxu0 0.0
    %694 = vmatmul.mubr.f32.gmra.mrb[0].mxu0 %v614
    %v695 = vpop.f32.mrb[0].mxu0
    %v696 = vadd.f32 0.0, %v695
    %v697 = vpop.f32.mrb[0].mxu0
    %698 = vmatprep.mubr.f32.mxu0 0.0
    %699 = vmatmul.mubr.f32.gmra.mrb[0].mxu0 %v617
    %v700 = vpop.f32.mrb[0].mxu0
    %v701 = vadd.f32 0.0, %v700
    %v702 = vpop.f32.mrb[0].mxu0
    %703 = vdwg.mxu0
    %s704 = sld [smem:[#allocation4]]
    %v705 = vstv %s704
    %v706 = vmul.f32 %v705, %v686
    %v707 = vmul.f32 %v705, %v691
    %v708 = vmul.f32 %v705, %v696
    %v709 = vmul.f32 %v705, %v701
    %v710 = vadd.f32 %v706, %v305
    %v711 = vadd.f32 %v707, %v306
    %v712 = vadd.f32 %v708, %v307
    %v713 = vadd.f32 %v709, %v308
    %v714 = vld [vmem:[%s7] sm:$0xff]
    %v715 = vld [vmem:[%s7 + $0x8] sm:$0xff]
    %v717 = vsel %vm199, %v714, 0
    %v720 = vsel %vm199, %v715, 0
    %722 = vmatprep.subr.mxu0 0.0
    %723 = vmatpush1.msra.mxu0 %v710
    %724 = vmatprep.subr.mxu0 0.0
    %725 = vmatpush1.msra.mxu0 %v711
    %726 = vmatprep.subr.mxu0 0.0
    %727 = vmatpush1.msra.mxu0 %v712
    %728 = vmatprep.subr.mxu0 0.0
    %729 = vmatpush1.msra.mxu0 %v713
    %730 = vmatprep.subr.mxu0 0.0
    %731 = vmatpush1.msra.mxu0 0.0
    %732 = vmatprep.subr.mxu0 0.0
    %733 = vmatpush1.msra.mxu0 0.0
    %734 = vmatprep.subr.mxu0 0.0
    %735 = vmatpush1.msra.mxu0 0.0
    %736 = vmatprep.subr.mxu0 0.0
    %737 = vmatpush1.msra.mxu0 0.0
    %738 = vmatprep.subr.mxu0 0.0
    %739 = vmatpush1.msra.mxu0 0.0
    %740 = vmatprep.subr.mxu0 0.0
    %741 = vmatpush1.msra.mxu0 0.0
    %742 = vmatprep.subr.mxu0 0.0
    %743 = vmatpush1.msra.mxu0 0.0
    %744 = vmatprep.subr.mxu0 0.0
    %745 = vmatpush1.msra.mxu0 0.0
    %746 = vmatprep.subr.mxu0 0.0
    %747 = vmatpush1.msra.mxu0 0.0
    %748 = vmatprep.subr.mxu0 0.0
    %749 = vmatpush1.msra.mxu0 0.0
    %750 = vmatprep.subr.mxu0 0.0
    %751 = vmatpush1.msra.mxu0 0.0
    %752 = vmatprep.subr.mxu0 0.0
    %753 = vmatpush1.msra.mxu0 0.0
    %754 = vmatprep.subr.mxu0 0.0
    %755 = vmatpush1.msra.mxu0 0.0
    %756 = vmatprep.subr.mxu0 0.0
    %757 = vmatpush1.msra.mxu0 0.0
    %758 = vmatprep.subr.mxu0 0.0
    %759 = vmatpush1.msra.mxu0 0.0
    %760 = vmatprep.subr.mxu0 0.0
    %761 = vmatpush1.msra.mxu0 0.0
    %762 = vmatprep.subr.mxu0 0.0
    %763 = vmatpush1.msra.mxu0 0.0
    %764 = vmatprep.subr.mxu0 0.0
    %765 = vmatpush1.msra.mxu0 0.0
    %766 = vmatprep.subr.mxu0 0.0
    %767 = vmatpush1.msra.mxu0 0.0
    %768 = vmatprep.subr.mxu0 0.0
    %769 = vmatpush1.msra.mxu0 0.0
    %770 = vmatprep.subr.mxu0 0.0
    %771 = vmatpush1.msra.mxu0 0.0
    %772 = vmatprep.subr.mxu0 0.0
    %773 = vmatpush1.msra.mxu0 0.0
    %774 = vmatprep.subr.mxu0 0.0
    %775 = vmatpush1.msra.mxu0 0.0
    %776 = vmatprep.subr.mxu0 0.0
    %777 = vmatpush1.msra.mxu0 0.0
    %778 = vmatprep.subr.mxu0 0.0
    %779 = vmatpush1.msra.mxu0 0.0
    %780 = vmatprep.subr.mxu0 0.0
    %781 = vmatpush1.msra.mxu0 0.0
    %782 = vmatprep.subr.mxu0 0.0
    %783 = vmatpush1.msra.mxu0 0.0
    %784 = vmatprep.subr.mxu0 0.0
    %785 = vmatpush1.msra.mxu0 0.0
    %786 = vmatprep.mubr.f32.mxu0 0.0
    %787 = vmatmul.mubr.f32.gmra.mrb[0].mxu0 %v717
    %v788 = vpop.f32.mrb[0].mxu0
    %v789 = vadd.f32 0.0, %v788
    %v790 = vpop.f32.mrb[0].mxu0
    %791 = vmatprep.mubr.f32.mxu0 0.0
    %792 = vmatmul.mubr.f32.gmra.mrb[0].mxu0 %v720
    %v793 = vpop.f32.mrb[0].mxu0
    %v794 = vadd.f32 0.0, %v793
    %v795 = vpop.f32.mrb[0].mxu0
    %796 = vdwg.mxu0
    %s797 = scalar_lea.vmem %s3, 32
    %v798 = vld [vmem:[%s797] sm:$0xff]
    %v799 = vld [vmem:[%s797 + $0x8] sm:$0xff]
    %v800 = vld [vmem:[%s797 + $0x10] sm:$0xff]
    %v801 = vld [vmem:[%s797 + $0x18] sm:$0xff]
    %s802 = scalar_lea.vmem %s4, 1
    %v803 = vld [vmem:[%s802] sm:$0x1]
    %v805 = vlaneseq
    %v806 = vshrl.u32 %v805, 7
    %v807 = vsub.s32 0, %v806
    %v808 = vrot.slane %v803, %v807
    %v811 = vsel %vm199, %v789, 0
    %v814 = vsel %vm199, %v794, 0
    %816 = vmatprep.subr.mxu0 0.0
    %817 = vmatpush1.msra.mxu0 %v798
    %818 = vmatprep.subr.mxu0 0.0
    %819 = vmatpush1.msra.mxu0 %v799
    %820 = vmatprep.subr.mxu0 0.0
    %821 = vmatpush1.msra.mxu0 %v800
    %822 = vmatprep.subr.mxu0 0.0
    %823 = vmatpush1.msra.mxu0 %v801
    %824 = vmatprep.subr.mxu0 0.0
    %825 = vmatpush1.msra.mxu0 0.0
    %826 = vmatprep.subr.mxu0 0.0
    %827 = vmatpush1.msra.mxu0 0.0
    %828 = vmatprep.subr.mxu0 0.0
    %829 = vmatpush1.msra.mxu0 0.0
    %830 = vmatprep.subr.mxu0 0.0
    %831 = vmatpush1.msra.mxu0 0.0
    %832 = vmatprep.subr.mxu0 0.0
    %833 = vmatpush1.msra.mxu0 0.0
    %834 = vmatprep.subr.mxu0 0.0
    %835 = vmatpush1.msra.mxu0 0.0
    %836 = vmatprep.subr.mxu0 0.0
    %837 = vmatpush1.msra.mxu0 0.0
    %838 = vmatprep.subr.mxu0 0.0
    %839 = vmatpush1.msra.mxu0 0.0
    %840 = vmatprep.subr.mxu0 0.0
    %841 = vmatpush1.msra.mxu0 0.0
    %842 = vmatprep.subr.mxu0 0.0
    %843 = vmatpush1.msra.mxu0 0.0
    %844 = vmatprep.subr.mxu0 0.0
    %845 = vmatpush1.msra.mxu0 0.0
    %846 = vmatprep.subr.mxu0 0.0
    %847 = vmatpush1.msra.mxu0 0.0
    %848 = vmatprep.subr.mxu0 0.0
    %849 = vmatpush1.msra.mxu0 0.0
    %850 = vmatprep.subr.mxu0 0.0
    %851 = vmatpush1.msra.mxu0 0.0
    %852 = vmatprep.subr.mxu0 0.0
    %853 = vmatpush1.msra.mxu0 0.0
    %854 = vmatprep.subr.mxu0 0.0
    %855 = vmatpush1.msra.mxu0 0.0
    %856 = vmatprep.subr.mxu0 0.0
    %857 = vmatpush1.msra.mxu0 0.0
    %858 = vmatprep.subr.mxu0 0.0
    %859 = vmatpush1.msra.mxu0 0.0
    %860 = vmatprep.subr.mxu0 0.0
    %861 = vmatpush1.msra.mxu0 0.0
    %862 = vmatprep.subr.mxu0 0.0
    %863 = vmatpush1.msra.mxu0 0.0
    %864 = vmatprep.subr.mxu0 0.0
    %865 = vmatpush1.msra.mxu0 0.0
    %866 = vmatprep.subr.mxu0 0.0
    %867 = vmatpush1.msra.mxu0 0.0
    %868 = vmatprep.subr.mxu0 0.0
    %869 = vmatpush1.msra.mxu0 0.0
    %870 = vmatprep.subr.mxu0 0.0
    %871 = vmatpush1.msra.mxu0 0.0
    %872 = vmatprep.subr.mxu0 0.0
    %873 = vmatpush1.msra.mxu0 0.0
    %874 = vmatprep.subr.mxu0 0.0
    %875 = vmatpush1.msra.mxu0 0.0
    %876 = vmatprep.subr.mxu0 0.0
    %877 = vmatpush1.msra.mxu0 0.0
    %878 = vmatprep.subr.mxu0 0.0
    %879 = vmatpush1.msra.mxu0 0.0
    %880 = vmatprep.mubr.f32.mxu0 0.0
    %881 = vmatmul.mubr.f32.gmra.mrb[0].mxu0 %v811
    %v882 = vpop.f32.mrb[0].mxu0
    %v883 = vadd.f32 %v808, %v882
    %v884 = vpop.f32.mrb[0].mxu0
    %885 = vmatprep.mubr.f32.mxu0 0.0
    %886 = vmatmul.mubr.f32.gmra.mrb[0].mxu0 %v814
    %v887 = vpop.f32.mrb[0].mxu0
    %v888 = vadd.f32 %v808, %v887
    %v889 = vpop.f32.mrb[0].mxu0
    %890 = vdwg.mxu0
    %vm891 = vcmp.ge.f32.partialorder %v883, 0.0
    %vm892 = vcmp.ge.f32.partialorder %v888, 0.0
    %v893 = vmul.f32 %v883, 0.01
    %v894 = vmul.f32 %v888, 0.01
    %v895 = vsel %vm891, %v883, %v893
    %v896 = vsel %vm892, %v888, %v894
    %s897 = scalar_lea.vmem %s5, 32
    %v898 = vld [vmem:[%s897] sm:$0xff]
    %v899 = vld [vmem:[%s897 + $0x8] sm:$0xff]
    %v900 = vld [vmem:[%s897 + $0x10] sm:$0xff]
    %v901 = vld [vmem:[%s897 + $0x18] sm:$0xff]
    %s902 = scalar_lea.vmem %s6, 1
    %v903 = vld [vmem:[%s902] sm:$0x1]
    %v905 = vlaneseq
    %v906 = vshrl.u32 %v905, 7
    %v907 = vsub.s32 0, %v906
    %v908 = vrot.slane %v903, %v907
    %v911 = vsel %vm199, %v895, 0
    %v914 = vsel %vm199, %v896, 0
    %916 = vmatprep.subr.mxu0 0.0
    %917 = vmatpush1.msra.mxu0 %v898
    %918 = vmatprep.subr.mxu0 0.0
    %919 = vmatpush1.msra.mxu0 %v899
    %920 = vmatprep.subr.mxu0 0.0
    %921 = vmatpush1.msra.mxu0 %v900
    %922 = vmatprep.subr.mxu0 0.0
    %923 = vmatpush1.msra.mxu0 %v901
    %924 = vmatprep.subr.mxu0 0.0
    %925 = vmatpush1.msra.mxu0 0.0
    %926 = vmatprep.subr.mxu0 0.0
    %927 = vmatpush1.msra.mxu0 0.0
    %928 = vmatprep.subr.mxu0 0.0
    %929 = vmatpush1.msra.mxu0 0.0
    %930 = vmatprep.subr.mxu0 0.0
    %931 = vmatpush1.msra.mxu0 0.0
    %932 = vmatprep.subr.mxu0 0.0
    %933 = vmatpush1.msra.mxu0 0.0
    %934 = vmatprep.subr.mxu0 0.0
    %935 = vmatpush1.msra.mxu0 0.0
    %936 = vmatprep.subr.mxu0 0.0
    %937 = vmatpush1.msra.mxu0 0.0
    %938 = vmatprep.subr.mxu0 0.0
    %939 = vmatpush1.msra.mxu0 0.0
    %940 = vmatprep.subr.mxu0 0.0
    %941 = vmatpush1.msra.mxu0 0.0
    %942 = vmatprep.subr.mxu0 0.0
    %943 = vmatpush1.msra.mxu0 0.0
    %944 = vmatprep.subr.mxu0 0.0
    %945 = vmatpush1.msra.mxu0 0.0
    %946 = vmatprep.subr.mxu0 0.0
    %947 = vmatpush1.msra.mxu0 0.0
    %948 = vmatprep.subr.mxu0 0.0
    %949 = vmatpush1.msra.mxu0 0.0
    %950 = vmatprep.subr.mxu0 0.0
    %951 = vmatpush1.msra.mxu0 0.0
    %952 = vmatprep.subr.mxu0 0.0
    %953 = vmatpush1.msra.mxu0 0.0
    %954 = vmatprep.subr.mxu0 0.0
    %955 = vmatpush1.msra.mxu0 0.0
    %956 = vmatprep.subr.mxu0 0.0
    %957 = vmatpush1.msra.mxu0 0.0
    %958 = vmatprep.subr.mxu0 0.0
    %959 = vmatpush1.msra.mxu0 0.0
    %960 = vmatprep.subr.mxu0 0.0
    %961 = vmatpush1.msra.mxu0 0.0
    %962 = vmatprep.subr.mxu0 0.0
    %963 = vmatpush1.msra.mxu0 0.0
    %964 = vmatprep.subr.mxu0 0.0
    %965 = vmatpush1.msra.mxu0 0.0
    %966 = vmatprep.subr.mxu0 0.0
    %967 = vmatpush1.msra.mxu0 0.0
    %968 = vmatprep.subr.mxu0 0.0
    %969 = vmatpush1.msra.mxu0 0.0
    %970 = vmatprep.subr.mxu0 0.0
    %971 = vmatpush1.msra.mxu0 0.0
    %972 = vmatprep.subr.mxu0 0.0
    %973 = vmatpush1.msra.mxu0 0.0
    %974 = vmatprep.subr.mxu0 0.0
    %975 = vmatpush1.msra.mxu0 0.0
    %976 = vmatprep.subr.mxu0 0.0
    %977 = vmatpush1.msra.mxu0 0.0
    %978 = vmatprep.subr.mxu0 0.0
    %979 = vmatpush1.msra.mxu0 0.0
    %980 = vmatprep.mubr.f32.mxu0 0.0
    %981 = vmatmul.mubr.f32.gmra.mrb[0].mxu0 %v911
    %v982 = vpop.f32.mrb[0].mxu0
    %v983 = vadd.f32 %v908, %v982
    %v984 = vpop.f32.mrb[0].mxu0
    %985 = vmatprep.mubr.f32.mxu0 0.0
    %986 = vmatmul.mubr.f32.gmra.mrb[0].mxu0 %v914
    %v987 = vpop.f32.mrb[0].mxu0
    %v988 = vadd.f32 %v908, %v987
    %v989 = vpop.f32.mrb[0].mxu0
    %990 = vdwg.mxu0
    %993 = vrot.lane.b32.xlu0 %v983, 120
    %v994 = vpop.permute.xlu0 %993
    %995 = vrot.lane.b32.xlu0 %v988, 120
    %v996 = vpop.permute.xlu0 %995
    %v997 = vsel %vm429, %v983, 0
    %v999 = vsel %vm429, %v988, 0
    %v1001 = vsel %vm429, %v994, 0
    %v1003 = vsel %vm429, %v996, 0
    %1005 = vmatprep.subr.mxu0 0.0
    %1006 = vmatpush1.xpose.msra.mxu0 %v1001
    %1007 = vmatprep.subr.mxu0 0.0
    %1008 = vmatpush1.xpose.msra.mxu0 %v1003
    %1009 = vmatprep.subr.mxu0 0.0
    %1010 = vmatpush1.xpose.msra.mxu0 0.0
    %1011 = vmatprep.subr.mxu0 0.0
    %1012 = vmatpush1.xpose.msra.mxu0 0.0
    %1013 = vmatprep.subr.mxu0 0.0
    %1014 = vmatpush1.xpose.msra.mxu0 0.0
    %1015 = vmatprep.subr.mxu0 0.0
    %1016 = vmatpush1.xpose.msra.mxu0 0.0
    %1017 = vmatprep.subr.mxu0 0.0
    %1018 = vmatpush1.xpose.msra.mxu0 0.0
    %1019 = vmatprep.subr.mxu0 0.0
    %1020 = vmatpush1.xpose.msra.mxu0 0.0
    %1021 = vmatprep.subr.mxu0 0.0
    %1022 = vmatpush1.xpose.msra.mxu0 0.0
    %1023 = vmatprep.subr.mxu0 0.0
    %1024 = vmatpush1.xpose.msra.mxu0 0.0
    %1025 = vmatprep.subr.mxu0 0.0
    %1026 = vmatpush1.xpose.msra.mxu0 0.0
    %1027 = vmatprep.subr.mxu0 0.0
    %1028 = vmatpush1.xpose.msra.mxu0 0.0
    %1029 = vmatprep.subr.mxu0 0.0
    %1030 = vmatpush1.xpose.msra.mxu0 0.0
    %1031 = vmatprep.subr.mxu0 0.0
    %1032 = vmatpush1.xpose.msra.mxu0 0.0
    %1033 = vmatprep.subr.mxu0 0.0
    %1034 = vmatpush1.xpose.msra.mxu0 0.0
    %1035 = vmatprep.subr.mxu0 0.0
    %1036 = vmatpush1.xpose.msra.mxu0 0.0
    %1037 = vmatprep.subr.mxu0 0.0
    %1038 = vmatpush1.xpose.msra.mxu0 0.0
    %1039 = vmatprep.subr.mxu0 0.0
    %1040 = vmatpush1.xpose.msra.mxu0 0.0
    %1041 = vmatprep.subr.mxu0 0.0
    %1042 = vmatpush1.xpose.msra.mxu0 0.0
    %1043 = vmatprep.subr.mxu0 0.0
    %1044 = vmatpush1.xpose.msra.mxu0 0.0
    %1045 = vmatprep.subr.mxu0 0.0
    %1046 = vmatpush1.xpose.msra.mxu0 0.0
    %1047 = vmatprep.subr.mxu0 0.0
    %1048 = vmatpush1.xpose.msra.mxu0 0.0
    %1049 = vmatprep.subr.mxu0 0.0
    %1050 = vmatpush1.xpose.msra.mxu0 0.0
    %1051 = vmatprep.subr.mxu0 0.0
    %1052 = vmatpush1.xpose.msra.mxu0 0.0
    %1053 = vmatprep.subr.mxu0 0.0
    %1054 = vmatpush1.xpose.msra.mxu0 0.0
    %1055 = vmatprep.subr.mxu0 0.0
    %1056 = vmatpush1.xpose.msra.mxu0 0.0
    %1057 = vmatprep.subr.mxu0 0.0
    %1058 = vmatpush1.xpose.msra.mxu0 0.0
    %1059 = vmatprep.subr.mxu0 0.0
    %1060 = vmatpush1.xpose.msra.mxu0 0.0
    %1061 = vmatprep.subr.mxu0 0.0
    %1062 = vmatpush1.xpose.msra.mxu0 0.0
    %1063 = vmatprep.subr.mxu0 0.0
    %1064 = vmatpush1.xpose.msra.mxu0 0.0
    %1065 = vmatprep.subr.mxu0 0.0
    %1066 = vmatpush1.xpose.msra.mxu0 0.0
    %1067 = vmatprep.subr.mxu0 0.0
    %1068 = vmatpush1.xpose.msra.mxu0 0.0
    %1069 = vmatprep.mubr.f32.mxu0 0.0
    %1070 = vmatmul.mubr.f32.gmra.mrb[0].mxu0 %v997
    %v1071 = vpop.f32.mrb[0].mxu0
    %v1072 = vadd.f32 0.0, %v1071
    %v1073 = vpop.f32.mrb[0].mxu0
    %1074 = vmatprep.mubr.f32.mxu0 0.0
    %1075 = vmatmul.mubr.f32.gmra.mrb[0].mxu0 %v999
    %v1076 = vpop.f32.mrb[0].mxu0
    %v1077 = vadd.f32 0.0, %v1076
    %v1078 = vpop.f32.mrb[0].mxu0
    %1079 = vdwg.mxu0
    %v1080 = vshra.s32 %v532, 3
    %v1081 = vshra.s32 %v533, 3
    %v1082 = vshra.s32 %v541, 3
    %vm1083 = vcmp.eq.s32.totalorder %v1080, %v1082
    %vm1084 = vcmp.eq.s32.totalorder %v1081, %v1082
    %v1085 = vsel %vm1083, %v1072, -1e+30
    %v1086 = vsel %vm1084, %v1077, -1e+30
    %vm1087 = vcmask 130048
    %v1088 = vsel %vm1087, %v1085, -inf
    %1089 = vmax.xlane.f32.xlu0 %v1088
    %v1090 = vpop.xlane.xlu0 %1089
    %v1091 = vsel %vm1087, %v1086, -inf
    %1092 = vmax.xlane.f32.xlu0 %v1091
    %v1093 = vpop.xlane.xlu0 %1092
    %v1094 = vsub.f32 %v1085, %v1090
    %v1095 = vsub.f32 %v1086, %v1093
    %v1096 = vmul.f32 %v1094, 1.442695
    %v1097 = vpow.pop %v1096
    %v1098 = vmul.f32 %v1095, 1.442695
    %v1099 = vpow.pop %v1098
    %v1100 = vsel %vm1087, %v1097, 0.0
    %1101 = vadd.xlane.f32.xlu0 %v1100
    %v1102 = vpop.xlane.xlu0 %1101
    %v1103 = vsel %vm1087, %v1099, 0.0
    %1104 = vadd.xlane.f32.xlu0 %v1103
    %v1105 = vpop.xlane.xlu0 %1104
    %v1106 = vrcp.pop %v1102
    %v1107 = vrcp.pop %v1105
    %v1108 = vmul.f32 %v1097, %v1106
    %v1109 = vmul.f32 %v1099, %v1107
    %1110 = vrot.lane.b32.xlu0 %v983, 112
    %v1111 = vpop.permute.xlu0 %1110
    %1112 = vrot.lane.b32.xlu0 %v988, 112
    %v1113 = vpop.permute.xlu0 %1112
    %v1117 = vsel %vm1087, %v1108, 0
    %v1120 = vsel %vm1087, %v1109, 0
    %1122 = vmatprep.subr.mxu0 0.0
    %1123 = vmatpush1.msra.mxu0 %v1111
    %1124 = vmatprep.subr.mxu0 0.0
    %1125 = vmatpush1.msra.mxu0 %v1113
    %1126 = vmatprep.subr.mxu0 0.0
    %1127 = vmatpush1.msra.mxu0 0.0
    %1128 = vmatprep.subr.mxu0 0.0
    %1129 = vmatpush1.msra.mxu0 0.0
    %1130 = vmatprep.subr.mxu0 0.0
    %1131 = vmatpush1.msra.mxu0 0.0
    %1132 = vmatprep.subr.mxu0 0.0
    %1133 = vmatpush1.msra.mxu0 0.0
    %1134 = vmatprep.subr.mxu0 0.0
    %1135 = vmatpush1.msra.mxu0 0.0
    %1136 = vmatprep.subr.mxu0 0.0
    %1137 = vmatpush1.msra.mxu0 0.0
    %1138 = vmatprep.subr.mxu0 0.0
    %1139 = vmatpush1.msra.mxu0 0.0
    %1140 = vmatprep.subr.mxu0 0.0
    %1141 = vmatpush1.msra.mxu0 0.0
    %1142 = vmatprep.subr.mxu0 0.0
    %1143 = vmatpush1.msra.mxu0 0.0
    %1144 = vmatprep.subr.mxu0 0.0
    %1145 = vmatpush1.msra.mxu0 0.0
    %1146 = vmatprep.subr.mxu0 0.0
    %1147 = vmatpush1.msra.mxu0 0.0
    %1148 = vmatprep.subr.mxu0 0.0
    %1149 = vmatpush1.msra.mxu0 0.0
    %1150 = vmatprep.subr.mxu0 0.0
    %1151 = vmatpush1.msra.mxu0 0.0
    %1152 = vmatprep.subr.mxu0 0.0
    %1153 = vmatpush1.msra.mxu0 0.0
    %1154 = vmatprep.subr.mxu0 0.0
    %1155 = vmatpush1.msra.mxu0 0.0
    %1156 = vmatprep.subr.mxu0 0.0
    %1157 = vmatpush1.msra.mxu0 0.0
    %1158 = vmatprep.subr.mxu0 0.0
    %1159 = vmatpush1.msra.mxu0 0.0
    %1160 = vmatprep.subr.mxu0 0.0
    %1161 = vmatpush1.msra.mxu0 0.0
    %1162 = vmatprep.subr.mxu0 0.0
    %1163 = vmatpush1.msra.mxu0 0.0
    %1164 = vmatprep.subr.mxu0 0.0
    %1165 = vmatpush1.msra.mxu0 0.0
    %1166 = vmatprep.subr.mxu0 0.0
    %1167 = vmatpush1.msra.mxu0 0.0
    %1168 = vmatprep.subr.mxu0 0.0
    %1169 = vmatpush1.msra.mxu0 0.0
    %1170 = vmatprep.subr.mxu0 0.0
    %1171 = vmatpush1.msra.mxu0 0.0
    %1172 = vmatprep.subr.mxu0 0.0
    %1173 = vmatpush1.msra.mxu0 0.0
    %1174 = vmatprep.subr.mxu0 0.0
    %1175 = vmatpush1.msra.mxu0 0.0
    %1176 = vmatprep.subr.mxu0 0.0
    %1177 = vmatpush1.msra.mxu0 0.0
    %1178 = vmatprep.subr.mxu0 0.0
    %1179 = vmatpush1.msra.mxu0 0.0
    %1180 = vmatprep.subr.mxu0 0.0
    %1181 = vmatpush1.msra.mxu0 0.0
    %1182 = vmatprep.subr.mxu0 0.0
    %1183 = vmatpush1.msra.mxu0 0.0
    %1184 = vmatprep.subr.mxu0 0.0
    %1185 = vmatpush1.msra.mxu0 0.0
    %1186 = vmatprep.mubr.f32.mxu0 0.0
    %1187 = vmatmul.mubr.f32.gmra.mrb[0].mxu0 %v1117
    %v1188 = vpop.f32.mrb[0].mxu0
    %v1189 = vadd.f32 0.0, %v1188
    %v1190 = vpop.f32.mrb[0].mxu0
    %1191 = vmatprep.mubr.f32.mxu0 0.0
    %1192 = vmatmul.mubr.f32.gmra.mrb[0].mxu0 %v1120
    %v1193 = vpop.f32.mrb[0].mxu0
    %v1194 = vadd.f32 0.0, %v1193
    %v1195 = vpop.f32.mrb[0].mxu0
    %1196 = vdwg.mxu0
    %s1197 = sld [smem:[#allocation4 + $0x1]]
    %v1198 = vstv %s1197
    %v1199 = vmul.f32 %v1198, %v1189
    %v1200 = vmul.f32 %v1198, %v1194
    %v1201 = vadd.f32 %v1199, %v895
    %v1202 = vadd.f32 %v1200, %v896
    %v1203 = vld [vmem:[%s8] sm:$0xff]
    %v1204 = vld [vmem:[%s8 + $0x8] sm:$0xff]
    %v1205 = vld [vmem:[%s8 + $0x10] sm:$0xff]
    %v1206 = vld [vmem:[%s8 + $0x18] sm:$0xff]
    %v1207 = vld [vmem:[#allocation2] sm:$0x1]
    %v1209 = vlaneseq
    %v1210 = vshrl.u32 %v1209, 7
    %v1211 = vsub.s32 0, %v1210
    %v1212 = vrot.slane %v1207, %v1211
    %v1215 = vsel %vm199, %v1201, 0
    %v1218 = vsel %vm199, %v1202, 0
    %1220 = vmatprep.subr.mxu0 0.0
    %1221 = vmatpush1.msra.mxu0 %v1203
    %1222 = vmatprep.subr.mxu0 0.0
    %1223 = vmatpush1.msra.mxu0 %v1204
    %1224 = vmatprep.subr.mxu0 0.0
    %1225 = vmatpush1.msra.mxu0 %v1205
    %1226 = vmatprep.subr.mxu0 0.0
    %1227 = vmatpush1.msra.mxu0 %v1206
    %1228 = vmatprep.subr.mxu0 0.0
    %1229 = vmatpush1.msra.mxu0 0.0
    %1230 = vmatprep.subr.mxu0 0.0
    %1231 = vmatpush1.msra.mxu0 0.0
    %1232 = vmatprep.subr.mxu0 0.0
    %1233 = vmatpush1.msra.mxu0 0.0
    %1234 = vmatprep.subr.mxu0 0.0
    %1235 = vmatpush1.msra.mxu0 0.0
    %1236 = vmatprep.subr.mxu0 0.0
    %1237 = vmatpush1.msra.mxu0 0.0
    %1238 = vmatprep.subr.mxu0 0.0
    %1239 = vmatpush1.msra.mxu0 0.0
    %1240 = vmatprep.subr.mxu0 0.0
    %1241 = vmatpush1.msra.mxu0 0.0
    %1242 = vmatprep.subr.mxu0 0.0
    %1243 = vmatpush1.msra.mxu0 0.0
    %1244 = vmatprep.subr.mxu0 0.0
    %1245 = vmatpush1.msra.mxu0 0.0
    %1246 = vmatprep.subr.mxu0 0.0
    %1247 = vmatpush1.msra.mxu0 0.0
    %1248 = vmatprep.subr.mxu0 0.0
    %1249 = vmatpush1.msra.mxu0 0.0
    %1250 = vmatprep.subr.mxu0 0.0
    %1251 = vmatpush1.msra.mxu0 0.0
    %1252 = vmatprep.subr.mxu0 0.0
    %1253 = vmatpush1.msra.mxu0 0.0
    %1254 = vmatprep.subr.mxu0 0.0
    %1255 = vmatpush1.msra.mxu0 0.0
    %1256 = vmatprep.subr.mxu0 0.0
    %1257 = vmatpush1.msra.mxu0 0.0
    %1258 = vmatprep.subr.mxu0 0.0
    %1259 = vmatpush1.msra.mxu0 0.0
    %1260 = vmatprep.subr.mxu0 0.0
    %1261 = vmatpush1.msra.mxu0 0.0
    %1262 = vmatprep.subr.mxu0 0.0
    %1263 = vmatpush1.msra.mxu0 0.0
    %1264 = vmatprep.subr.mxu0 0.0
    %1265 = vmatpush1.msra.mxu0 0.0
    %1266 = vmatprep.subr.mxu0 0.0
    %1267 = vmatpush1.msra.mxu0 0.0
    %1268 = vmatprep.subr.mxu0 0.0
    %1269 = vmatpush1.msra.mxu0 0.0
    %1270 = vmatprep.subr.mxu0 0.0
    %1271 = vmatpush1.msra.mxu0 0.0
    %1272 = vmatprep.subr.mxu0 0.0
    %1273 = vmatpush1.msra.mxu0 0.0
    %1274 = vmatprep.subr.mxu0 0.0
    %1275 = vmatpush1.msra.mxu0 0.0
    %1276 = vmatprep.subr.mxu0 0.0
    %1277 = vmatpush1.msra.mxu0 0.0
    %1278 = vmatprep.subr.mxu0 0.0
    %1279 = vmatpush1.msra.mxu0 0.0
    %1280 = vmatprep.subr.mxu0 0.0
    %1281 = vmatpush1.msra.mxu0 0.0
    %1282 = vmatprep.subr.mxu0 0.0
    %1283 = vmatpush1.msra.mxu0 0.0
    %1284 = vmatprep.mubr.f32.mxu0 0.0
    %1285 = vmatmul.mubr.f32.gmra.mrb[0].mxu0 %v1215
    %v1286 = vpop.f32.mrb[0].mxu0
    %v1287 = vadd.f32 %v1212, %v1286
    %v1288 = vpop.f32.mrb[0].mxu0
    %1289 = vmatprep.mubr.f32.mxu0 0.0
    %1290 = vmatmul.mubr.f32.gmra.mrb[0].mxu0 %v1218
    %v1291 = vpop.f32.mrb[0].mxu0
    %v1292 = vadd.f32 %v1212, %v1291
    %v1293 = vpop.f32.mrb[0].mxu0
    %1294 = vdwg.mxu0
    %vm1295 = vcmp.ge.f32.partialorder %v1287, 0.0
    %vm1296 = vcmp.ge.f32.partialorder %v1292, 0.0
    %v1297 = vmul.f32 %v1287, 0.01
    %v1298 = vmul.f32 %v1292, 0.01
    %v1299 = vsel %vm1295, %v1287, %v1297
    %v1300 = vsel %vm1296, %v1292, %v1298
    %v1301 = vld [vmem:[%s10] sm:$0x3]
    %v1302 = vld [vmem:[#allocation3] sm:$0x1]
    %v1304 = vlaneseq
    %v1305 = vshrl.u32 %v1304, 7
    %v1306 = vsub.s32 0, %v1305
    %v1307 = vrot.slane %v1302, %v1306
    %v1310 = vsel %vm1087, %v1301, 0
    %1312 = vmatprep.subr.mxu0 0.0
    %1313 = vmatpush1.msra.mxu0 %v1299
    %1314 = vmatprep.subr.mxu0 0.0
    %1315 = vmatpush1.msra.mxu0 %v1300
    %1316 = vmatprep.subr.mxu0 0.0
    %1317 = vmatpush1.msra.mxu0 0.0
    %1318 = vmatprep.subr.mxu0 0.0
    %1319 = vmatpush1.msra.mxu0 0.0
    %1320 = vmatprep.subr.mxu0 0.0
    %1321 = vmatpush1.msra.mxu0 0.0
    %1322 = vmatprep.subr.mxu0 0.0
    %1323 = vmatpush1.msra.mxu0 0.0
    %1324 = vmatprep.subr.mxu0 0.0
    %1325 = vmatpush1.msra.mxu0 0.0
    %1326 = vmatprep.subr.mxu0 0.0
    %1327 = vmatpush1.msra.mxu0 0.0
    %1328 = vmatprep.subr.mxu0 0.0
    %1329 = vmatpush1.msra.mxu0 0.0
    %1330 = vmatprep.subr.mxu0 0.0
    %1331 = vmatpush1.msra.mxu0 0.0
    %1332 = vmatprep.subr.mxu0 0.0
    %1333 = vmatpush1.msra.mxu0 0.0
    %1334 = vmatprep.subr.mxu0 0.0
    %1335 = vmatpush1.msra.mxu0 0.0
    %1336 = vmatprep.subr.mxu0 0.0
    %1337 = vmatpush1.msra.mxu0 0.0
    %1338 = vmatprep.subr.mxu0 0.0
    %1339 = vmatpush1.msra.mxu0 0.0
    %1340 = vmatprep.subr.mxu0 0.0
    %1341 = vmatpush1.msra.mxu0 0.0
    %1342 = vmatprep.subr.mxu0 0.0
    %1343 = vmatpush1.msra.mxu0 0.0
    %1344 = vmatprep.subr.mxu0 0.0
    %1345 = vmatpush1.msra.mxu0 0.0
    %1346 = vmatprep.subr.mxu0 0.0
    %1347 = vmatpush1.msra.mxu0 0.0
    %1348 = vmatprep.subr.mxu0 0.0
    %1349 = vmatpush1.msra.mxu0 0.0
    %1350 = vmatprep.subr.mxu0 0.0
    %1351 = vmatpush1.msra.mxu0 0.0
    %1352 = vmatprep.subr.mxu0 0.0
    %1353 = vmatpush1.msra.mxu0 0.0
    %1354 = vmatprep.subr.mxu0 0.0
    %1355 = vmatpush1.msra.mxu0 0.0
    %1356 = vmatprep.subr.mxu0 0.0
    %1357 = vmatpush1.msra.mxu0 0.0
    %1358 = vmatprep.subr.mxu0 0.0
    %1359 = vmatpush1.msra.mxu0 0.0
    %1360 = vmatprep.subr.mxu0 0.0
    %1361 = vmatpush1.msra.mxu0 0.0
    %1362 = vmatprep.subr.mxu0 0.0
    %1363 = vmatpush1.msra.mxu0 0.0
    %1364 = vmatprep.subr.mxu0 0.0
    %1365 = vmatpush1.msra.mxu0 0.0
    %1366 = vmatprep.subr.mxu0 0.0
    %1367 = vmatpush1.msra.mxu0 0.0
    %1368 = vmatprep.subr.mxu0 0.0
    %1369 = vmatpush1.msra.mxu0 0.0
    %1370 = vmatprep.subr.mxu0 0.0
    %1371 = vmatpush1.msra.mxu0 0.0
    %1372 = vmatprep.subr.mxu0 0.0
    %1373 = vmatpush1.msra.mxu0 0.0
    %1374 = vmatprep.subr.mxu0 0.0
    %1375 = vmatpush1.msra.mxu0 0.0
    %1376 = vmatprep.mubr.f32.mxu0 0.0
    %1377 = vmatmul.mubr.f32.gmra.mrb[0].mxu0 %v1310
    %v1378 = vpop.f32.mrb[0].mxu0
    %v1379 = vadd.f32 %v1307, %v1378
    %v1380 = vpop.f32.mrb[0].mxu0
    %1381 = vdwg.mxu0
    %vm1382 = vcmask 1024
    %1383 = vst.msk [vmem:[%s13] sm:$0x3] %vm1382, %v1379
    // Predicated region
    $region58: #{_fused_forward.1} parent=1 // pred_check
      _
    $region59: #{_fused_forward.1} parent=1 // pred_check_branch
      %1385 = sbr.rel (0) target = $region61
    $region60: #{_fused_forward.1} parent=1 // pred_region
      _
    $region61: #{_fused_forward.1} parent=1 // pred_fallthru
      _
    // Predicated region
    $region62: #{_fused_forward.1} parent=1 // pred_check
      _
    $region63: #{_fused_forward.1} parent=1 // pred_check_branch
      %1387 = sbr.rel (0) target = $region65
    $region64: #{_fused_forward.1} parent=1 // pred_region
      _
    $region65: #{_fused_forward.1} parent=1 // pred_fallthru
      _
    %1388 = vsyncpa [#allocation5], 1

</llo_original>
